<compile_context>
chip_gen: v7x
topology: tpu7x:2x2x1
jax: 0.10.0
libtpu: 0.0.40
codegen_flags: <defaults>
</compile_context>

<pallas_src>
import jax
import jax.numpy as jnp
from jax.experimental import pallas as pl
from jax.experimental.pallas import tpu as pltpu

LANE = 128


def _round_up(x, m):
    return (x + m - 1) // m * m


def mlp_kernel(x_ref,
               w1_ref, b1_ref,
               w2_ref, b2_ref,
               w3_ref, b3_ref,
               w4_ref, b4_ref,
               w5_ref, b5_ref,
               o_ref):
    """x tile (TB, D_in_pad) f32 -> fc1..fc4 + ReLU -> fc5, all VMEM resident.

    Weights are bf16; each dot feeds the MXU with bf16 operands and accumulates
    in f32 (preferred_element_type). ReLU / bias-add run on the f32 result on
    the VPU, so this is safe on v5e (no bf16 VPU) as well.
    """
    h = jnp.dot(x_ref[...].astype(jnp.bfloat16), w1_ref[...],
                preferred_element_type=jnp.float32) + b1_ref[...]
    h = jnp.maximum(h, 0.0)

    h = jnp.dot(h.astype(jnp.bfloat16), w2_ref[...],
                preferred_element_type=jnp.float32) + b2_ref[...]
    h = jnp.maximum(h, 0.0)

    h = jnp.dot(h.astype(jnp.bfloat16), w3_ref[...],
                preferred_element_type=jnp.float32) + b3_ref[...]
    h = jnp.maximum(h, 0.0)

    h = jnp.dot(h.astype(jnp.bfloat16), w4_ref[...],
                preferred_element_type=jnp.float32) + b4_ref[...]
    h = jnp.maximum(h, 0.0)

    out = jnp.dot(h.astype(jnp.bfloat16), w5_ref[...],
                  preferred_element_type=jnp.float32) + b5_ref[...]
    o_ref[...] = out.astype(o_ref.dtype)


def init_linear(key, fan_in, fan_out):
    """Mimics torch.nn.Linear init U(-1/sqrt(fan_in), 1/sqrt(fan_in)); W stored
    (in, out) so the forward is x @ W + b (== PyTorch x @ W_pt.T + b)."""
    kw, kb = jax.random.split(key)
    bound = 1.0 / jnp.sqrt(jnp.float32(fan_in))
    w = jax.random.uniform(kw, (fan_in, fan_out), jnp.float32, -bound, bound)
    b = jax.random.uniform(kb, (1, fan_out), jnp.float32, -bound, bound)
    return w, b


def prepare_params(params_f32):
    """One-time (init-time) prep: cast weights to bf16, zero-pad layer-1's
    input dim and the last layer's output dim up to a 128-lane multiple.
    Biases stay f32 (1, out_pad)."""
    n_layers = len(params_f32)
    prepared = []
    for i, (w, b) in enumerate(params_f32):
        fan_in, fan_out = w.shape
        k_pad = _round_up(fan_in, LANE) if i == 0 else fan_in
        n_pad = _round_up(fan_out, LANE) if i == n_layers - 1 else fan_out
        w_p = jnp.zeros((k_pad, n_pad), jnp.bfloat16)
        w_p = w_p.at[:fan_in, :fan_out].set(w.astype(jnp.bfloat16))
        b_p = jnp.zeros((1, n_pad), jnp.float32)
        b_p = b_p.at[:, :fan_out].set(b)
        prepared.append((w_p, b_p))
    return prepared


def q_network_forward(x, prepared, n_actions):
    """x: (batch, input_dims) f32. prepared: output of prepare_params."""
    (w1, b1), (w2, b2), (w3, b3), (w4, b4), (w5, b5) = prepared
    batch, d_in = x.shape
    d_in_pad = w1.shape[0]
    out_pad = w5.shape[1]

    # Batch tile: full (rounded-up) batch for small calls; 512-row tiles for
    # large batches so activations pipeline while weights stay VMEM resident.
    tb = 512 if batch > 512 else _round_up(batch, 8)
    b_pad = _round_up(batch, tb)

    x_p = jnp.zeros((b_pad, d_in_pad), jnp.float32)
    x_p = x_p.at[:batch, :d_in].set(x)

    args = (x_p, w1, b1, w2, b2, w3, b3, w4, b4, w5, b5)

    def const_spec(a):
        # Constant block index -> DMA'd once, resident across batch tiles.
        return pl.BlockSpec(a.shape, lambda i: (0, 0))

    in_specs = [pl.BlockSpec((tb, d_in_pad), lambda i: (i, 0))]
    in_specs += [const_spec(a) for a in args[1:]]

    out = pl.pallas_call(
        mlp_kernel,
        out_shape=jax.ShapeDtypeStruct((b_pad, out_pad), jnp.float32),
        grid=(b_pad // tb,),
        in_specs=in_specs,
        out_specs=pl.BlockSpec((tb, out_pad), lambda i: (i, 0)),
        compiler_params=pltpu.CompilerParams(
            dimension_semantics=("parallel",)),
    )(*args)

    return out[:batch, :n_actions]


def reference_forward(x, params_f32):
    """Pure-JAX reference mirroring the kernel's bf16 weight/activation
    quantization (f32 accumulate) so tolerances stay tight."""
    h = x
    n = len(params_f32)
    for i, (w, b) in enumerate(params_f32):
        wq = w.astype(jnp.bfloat16).astype(jnp.float32)
        hq = h.astype(jnp.bfloat16).astype(jnp.float32)
        h = hq @ wq + b
        if i < n - 1:
            h = jnp.maximum(h, 0.0)
    return h


if __name__ == "__main__":
    # Small shapes consistent with the module: batch=8, input_dims=32, n_actions=4.
    batch, input_dims, n_actions = 8, 32, 4
    dims = [input_dims, 512, 512, 512, 256, n_actions]

    key = jax.random.PRNGKey(0)
    keys = jax.random.split(key, len(dims))  # last key for the input
    params_f32 = [init_linear(keys[i], dims[i], dims[i + 1]) for i in range(5)]
    x = jax.random.normal(keys[-1], (batch, input_dims), jnp.float32)

    # TODO(synk): optim.Adam and nn.MSELoss are training-time constructs, not
    # part of the forward pass, so they are intentionally not implemented.
    prepared = prepare_params(params_f32)
    actions = q_network_forward(x, prepared, n_actions)
    jax.block_until_ready(actions)

    ref = reference_forward(x, params_f32)
    assert actions.shape == (batch, n_actions)
    assert jnp.allclose(actions, ref, atol=1e-2, rtol=1e-2), float(
        jnp.max(jnp.abs(actions - ref)))
    print("KERNEL_OK")
</pallas_src>

<mosaic_0001>
module attributes {stable_mosaic.version = 11 : i64} {
  func.func @mlp_kernel(%arg0: i32, %arg1: memref<8x128xf32, #tpu.memory_space<vmem>>, %arg2: memref<128x512xbf16, #tpu.memory_space<vmem>>, %arg3: memref<1x512xf32, #tpu.memory_space<vmem>>, %arg4: memref<512x512xbf16, #tpu.memory_space<vmem>>, %arg5: memref<1x512xf32, #tpu.memory_space<vmem>>, %arg6: memref<512x512xbf16, #tpu.memory_space<vmem>>, %arg7: memref<1x512xf32, #tpu.memory_space<vmem>>, %arg8: memref<512x256xbf16, #tpu.memory_space<vmem>>, %arg9: memref<1x256xf32, #tpu.memory_space<vmem>>, %arg10: memref<256x128xbf16, #tpu.memory_space<vmem>>, %arg11: memref<1x128xf32, #tpu.memory_space<vmem>>, %arg12: memref<8x128xf32, #tpu.memory_space<vmem>>) attributes {dimension_semantics = [#tpu.dimension_semantics<parallel>], iteration_bounds = array<i64: 1>, scalar_prefetch = 0 : i64, scratch_operands = 0 : i64, tpu.core_type = #tpu.core_type<tc>, window_params = [{transform_indices = @transform_0, window_bounds = array<i64: 8, 128>}, {pipeline_mode = #tpu.pipeline_mode<synchronous>, transform_indices = @transform_1, window_bounds = array<i64: 128, 512>}, {pipeline_mode = #tpu.pipeline_mode<synchronous>, transform_indices = @transform_2, window_bounds = array<i64: 1, 512>}, {pipeline_mode = #tpu.pipeline_mode<synchronous>, transform_indices = @transform_3, window_bounds = array<i64: 512, 512>}, {pipeline_mode = #tpu.pipeline_mode<synchronous>, transform_indices = @transform_4, window_bounds = array<i64: 1, 512>}, {pipeline_mode = #tpu.pipeline_mode<synchronous>, transform_indices = @transform_5, window_bounds = array<i64: 512, 512>}, {pipeline_mode = #tpu.pipeline_mode<synchronous>, transform_indices = @transform_6, window_bounds = array<i64: 1, 512>}, {pipeline_mode = #tpu.pipeline_mode<synchronous>, transform_indices = @transform_7, window_bounds = array<i64: 512, 256>}, {pipeline_mode = #tpu.pipeline_mode<synchronous>, transform_indices = @transform_8, window_bounds = array<i64: 1, 256>}, {pipeline_mode = #tpu.pipeline_mode<synchronous>, transform_indices = @transform_9, window_bounds = array<i64: 256, 128>}, {pipeline_mode = #tpu.pipeline_mode<synchronous>, transform_indices = @transform_10, window_bounds = array<i64: 1, 128>}, {transform_indices = @transform_11, window_bounds = array<i64: 8, 128>}]} {
    %c0 = arith.constant 0 : index
    %c0_0 = arith.constant 0 : index
    %0 = vector.load %arg1[%c0, %c0_0] : memref<8x128xf32, #tpu.memory_space<vmem>>, vector<8x128xf32>
    %1 = arith.truncf %0 : vector<8x128xf32> to vector<8x128xbf16>
    %c0_1 = arith.constant 0 : index
    %c0_2 = arith.constant 0 : index
    %2 = vector.load %arg2[%c0_1, %c0_2] : memref<128x512xbf16, #tpu.memory_space<vmem>>, vector<128x512xbf16>
    %cst = arith.constant dense<0.000000e+00> : vector<8x512xf32>
    %3 = tpu.matmul %1, %2, %cst {dimension_numbers = #tpu.dot_dimension_numbers<[1], [0], [0], [1], [0, 0, 1, 1], [], []>} : vector<8x128xbf16>, vector<128x512xbf16>, vector<8x512xf32> -> vector<8x512xf32>
    %c0_3 = arith.constant 0 : index
    %c0_4 = arith.constant 0 : index
    %4 = vector.load %arg3[%c0_3, %c0_4] : memref<1x512xf32, #tpu.memory_space<vmem>>, vector<1x512xf32>
    %5 = vector.broadcast %4 : vector<1x512xf32> to vector<8x512xf32>
    %6 = arith.addf %3, %5 : vector<8x512xf32>
    %cst_5 = arith.constant 0.000000e+00 : f32
    %7 = vector.broadcast %cst_5 : f32 to vector<8x512xf32>
    %8 = arith.maximumf %6, %7 : vector<8x512xf32>
    %9 = arith.truncf %8 : vector<8x512xf32> to vector<8x512xbf16>
    %c0_6 = arith.constant 0 : index
    %c0_7 = arith.constant 0 : index
    %10 = vector.load %arg4[%c0_6, %c0_7] : memref<512x512xbf16, #tpu.memory_space<vmem>>, vector<512x512xbf16>
    %cst_8 = arith.constant dense<0.000000e+00> : vector<8x512xf32>
    %11 = tpu.matmul %9, %10, %cst_8 {dimension_numbers = #tpu.dot_dimension_numbers<[1], [0], [0], [1], [0, 0, 1, 1], [], []>} : vector<8x512xbf16>, vector<512x512xbf16>, vector<8x512xf32> -> vector<8x512xf32>
    %c0_9 = arith.constant 0 : index
    %c0_10 = arith.constant 0 : index
    %12 = vector.load %arg5[%c0_9, %c0_10] : memref<1x512xf32, #tpu.memory_space<vmem>>, vector<1x512xf32>
    %13 = vector.broadcast %12 : vector<1x512xf32> to vector<8x512xf32>
    %14 = arith.addf %11, %13 : vector<8x512xf32>
    %cst_11 = arith.constant 0.000000e+00 : f32
    %15 = vector.broadcast %cst_11 : f32 to vector<8x512xf32>
    %16 = arith.maximumf %14, %15 : vector<8x512xf32>
    %17 = arith.truncf %16 : vector<8x512xf32> to vector<8x512xbf16>
    %c0_12 = arith.constant 0 : index
    %c0_13 = arith.constant 0 : index
    %18 = vector.load %arg6[%c0_12, %c0_13] : memref<512x512xbf16, #tpu.memory_space<vmem>>, vector<512x512xbf16>
    %cst_14 = arith.constant dense<0.000000e+00> : vector<8x512xf32>
    %19 = tpu.matmul %17, %18, %cst_14 {dimension_numbers = #tpu.dot_dimension_numbers<[1], [0], [0], [1], [0, 0, 1, 1], [], []>} : vector<8x512xbf16>, vector<512x512xbf16>, vector<8x512xf32> -> vector<8x512xf32>
    %c0_15 = arith.constant 0 : index
    %c0_16 = arith.constant 0 : index
    %20 = vector.load %arg7[%c0_15, %c0_16] : memref<1x512xf32, #tpu.memory_space<vmem>>, vector<1x512xf32>
    %21 = vector.broadcast %20 : vector<1x512xf32> to vector<8x512xf32>
    %22 = arith.addf %19, %21 : vector<8x512xf32>
    %cst_17 = arith.constant 0.000000e+00 : f32
    %23 = vector.broadcast %cst_17 : f32 to vector<8x512xf32>
    %24 = arith.maximumf %22, %23 : vector<8x512xf32>
    %25 = arith.truncf %24 : vector<8x512xf32> to vector<8x512xbf16>
    %c0_18 = arith.constant 0 : index
    %c0_19 = arith.constant 0 : index
    %26 = vector.load %arg8[%c0_18, %c0_19] : memref<512x256xbf16, #tpu.memory_space<vmem>>, vector<512x256xbf16>
    %cst_20 = arith.constant dense<0.000000e+00> : vector<8x256xf32>
    %27 = tpu.matmul %25, %26, %cst_20 {dimension_numbers = #tpu.dot_dimension_numbers<[1], [0], [0], [1], [0, 0, 1, 1], [], []>} : vector<8x512xbf16>, vector<512x256xbf16>, vector<8x256xf32> -> vector<8x256xf32>
    %c0_21 = arith.constant 0 : index
    %c0_22 = arith.constant 0 : index
    %28 = vector.load %arg9[%c0_21, %c0_22] : memref<1x256xf32, #tpu.memory_space<vmem>>, vector<1x256xf32>
    %29 = vector.broadcast %28 : vector<1x256xf32> to vector<8x256xf32>
    %30 = arith.addf %27, %29 : vector<8x256xf32>
    %cst_23 = arith.constant 0.000000e+00 : f32
    %31 = vector.broadcast %cst_23 : f32 to vector<8x256xf32>
    %32 = arith.maximumf %30, %31 : vector<8x256xf32>
    %33 = arith.truncf %32 : vector<8x256xf32> to vector<8x256xbf16>
    %c0_24 = arith.constant 0 : index
    %c0_25 = arith.constant 0 : index
    %34 = vector.load %arg10[%c0_24, %c0_25] : memref<256x128xbf16, #tpu.memory_space<vmem>>, vector<256x128xbf16>
    %cst_26 = arith.constant dense<0.000000e+00> : vector<8x128xf32>
    %35 = tpu.matmul %33, %34, %cst_26 {dimension_numbers = #tpu.dot_dimension_numbers<[1], [0], [0], [1], [0, 0, 1, 1], [], []>} : vector<8x256xbf16>, vector<256x128xbf16>, vector<8x128xf32> -> vector<8x128xf32>
    %c0_27 = arith.constant 0 : index
    %c0_28 = arith.constant 0 : index
    %36 = vector.load %arg11[%c0_27, %c0_28] : memref<1x128xf32, #tpu.memory_space<vmem>>, vector<1x128xf32>
    %37 = vector.broadcast %36 : vector<1x128xf32> to vector<8x128xf32>
    %38 = arith.addf %35, %37 : vector<8x128xf32>
    %c0_29 = arith.constant 0 : index
    %c0_30 = arith.constant 0 : index
    %39 = vector.load %arg12[%c0_29, %c0_30] : memref<8x128xf32, #tpu.memory_space<vmem>>, vector<8x128xf32>
    tpu.vector_store %arg12[%c0_29, %c0_30], %38 {strides = array<i32>} : memref<8x128xf32, #tpu.memory_space<vmem>>, vector<8x128xf32>,
    return
  }
  func.func @transform_0(%arg0: i32) -> (i32, i32) {
    %c0_i32 = arith.constant 0 : i32
    %c0_i32_0 = arith.constant 0 : i32
    return %arg0, %c0_i32 : i32, i32
  }
  func.func @transform_1(%arg0: i32) -> (i32, i32) {
    %c0_i32 = arith.constant 0 : i32
    %c0_i32_0 = arith.constant 0 : i32
    %c0_i32_1 = arith.constant 0 : i32
    return %c0_i32, %c0_i32_0 : i32, i32
  }
  func.func @transform_2(%arg0: i32) -> (i32, i32) {
    %c0_i32 = arith.constant 0 : i32
    %c0_i32_0 = arith.constant 0 : i32
    %c0_i32_1 = arith.constant 0 : i32
    return %c0_i32, %c0_i32_0 : i32, i32
  }
  func.func @transform_3(%arg0: i32) -> (i32, i32) {
    %c0_i32 = arith.constant 0 : i32
    %c0_i32_0 = arith.constant 0 : i32
    %c0_i32_1 = arith.constant 0 : i32
    return %c0_i32, %c0_i32_0 : i32, i32
  }
  func.func @transform_4(%arg0: i32) -> (i32, i32) {
    %c0_i32 = arith.constant 0 : i32
    %c0_i32_0 = arith.constant 0 : i32
    %c0_i32_1 = arith.constant 0 : i32
    return %c0_i32, %c0_i32_0 : i32, i32
  }
  func.func @transform_5(%arg0: i32) -> (i32, i32) {
    %c0_i32 = arith.constant 0 : i32
    %c0_i32_0 = arith.constant 0 : i32
    %c0_i32_1 = arith.constant 0 : i32
    return %c0_i32, %c0_i32_0 : i32, i32
  }
  func.func @transform_6(%arg0: i32) -> (i32, i32) {
    %c0_i32 = arith.constant 0 : i32
    %c0_i32_0 = arith.constant 0 : i32
    %c0_i32_1 = arith.constant 0 : i32
    return %c0_i32, %c0_i32_0 : i32, i32
  }
  func.func @transform_7(%arg0: i32) -> (i32, i32) {
    %c0_i32 = arith.constant 0 : i32
    %c0_i32_0 = arith.constant 0 : i32
    %c0_i32_1 = arith.constant 0 : i32
    return %c0_i32, %c0_i32_0 : i32, i32
  }
  func.func @transform_8(%arg0: i32) -> (i32, i32) {
    %c0_i32 = arith.constant 0 : i32
    %c0_i32_0 = arith.constant 0 : i32
    %c0_i32_1 = arith.constant 0 : i32
    return %c0_i32, %c0_i32_0 : i32, i32
  }
  func.func @transform_9(%arg0: i32) -> (i32, i32) {
    %c0_i32 = arith.constant 0 : i32
    %c0_i32_0 = arith.constant 0 : i32
    %c0_i32_1 = arith.constant 0 : i32
    return %c0_i32, %c0_i32_0 : i32, i32
  }
  func.func @transform_10(%arg0: i32) -> (i32, i32) {
    %c0_i32 = arith.constant 0 : i32
    %c0_i32_0 = arith.constant 0 : i32
    %c0_i32_1 = arith.constant 0 : i32
    return %c0_i32, %c0_i32_0 : i32, i32
  }
  func.func @transform_11(%arg0: i32) -> (i32, i32) {
    %c0_i32 = arith.constant 0 : i32
    %c0_i32_0 = arith.constant 0 : i32
    return %arg0, %c0_i32 : i32, i32
  }
}

</mosaic_0001>

<llo_original>
// kernel: tpu_custom_call.1
$region0: #{tpu_custom_call.1}
  #allocation0 [shape = 'u32[]', space=smem, size = 0x4, offset = 0x4, fixed_abs, tag = 'smem constant byte address 0x4 - core index']
  #allocation1 [shape = 'u32[144,128]{1,0:T(1,128)}', space=vmem, size = 0x12000, scoped, tag = 'internal scratch']
  %s0 = inlined_call_operand.hbm [shape: f32[8,128], index: 0, kind: input, shape index: {}]
  %s1 = inlined_call_operand.hbm [shape: bf16[128,512], index: 1, kind: input, shape index: {}]
  %s2 = inlined_call_operand.vmem [shape: f32[1,512], index: 2, kind: input, shape index: {}]
  %s3 = inlined_call_operand.hbm [shape: bf16[512,512], index: 3, kind: input, shape index: {}]
  %s4 = inlined_call_operand.vmem [shape: f32[1,512], index: 4, kind: input, shape index: {}]
  %s5 = inlined_call_operand.hbm [shape: bf16[512,512], index: 5, kind: input, shape index: {}]
  %s6 = inlined_call_operand.vmem [shape: f32[1,512], index: 6, kind: input, shape index: {}]
  %s7 = inlined_call_operand.hbm [shape: bf16[512,256], index: 7, kind: input, shape index: {}]
  %s8 = inlined_call_operand.vmem [shape: f32[1,256], index: 8, kind: input, shape index: {}]
  %s9 = inlined_call_operand.hbm [shape: bf16[256,128], index: 9, kind: input, shape index: {}]
  %s10 = inlined_call_operand.vmem [shape: f32[1,128], index: 10, kind: input, shape index: {}]
  %s11 = inlined_call_operand.hbm [shape: f32[8,128], index: 11, kind: output, shape index: {}]
  %s12 = sld [smem:[#allocation0]]
  $region78: #{tpu_custom_call.1} parent=0
    _
  %s14 = ssub.s32 1, %s12
  %s15 = scalar_select 0, %s14, %s12
  $region1: #{tpu_custom_call.1} parent=0
    #allocation2 [shape = 'u8[4096]{0}', space=vmem, size = 0x1000, scoped, tag = 'input window, operand 0, single buffered']
    #allocation3 [shape = 's32[1]{0}', space=sflag, size = 0x4, scoped, tag = 'scoped memory for tpu_custom_call.1']
    #allocation4 [shape = 's32[1]{0}', space=sflag, size = 0x4, scoped, tag = 'scoped memory for tpu_custom_call.1']
    #allocation5 [shape = 'u8[131072]{0}', space=vmem, size = 0x20000, scoped, tag = 'input window, operand 1, single buffered']
    #allocation6 [shape = 's32[1]{0}', space=sflag, size = 0x4, scoped, tag = 'scoped memory for tpu_custom_call.1']
    #allocation7 [shape = 'u8[524288]{0}', space=vmem, size = 0x80000, scoped, tag = 'input window, operand 3, single buffered']
    #allocation8 [shape = 'u8[524288]{0}', space=vmem, size = 0x80000, scoped, tag = 'input window, operand 5, single buffered']
    #allocation9 [shape = 's32[1]{0}', space=sflag, size = 0x4, scoped, tag = 'scoped memory for tpu_custom_call.1']
    #allocation10 [shape = 'u8[262144]{0}', space=vmem, size = 0x40000, scoped, tag = 'input window, operand 7, single buffered']
    #allocation11 [shape = 'u8[65536]{0}', space=vmem, size = 0x10000, scoped, tag = 'input window, operand 9, single buffered']
    #allocation12 [shape = 's32[1]{0}', space=sflag, size = 0x4, scoped, tag = 'scoped memory for tpu_custom_call.1']
    #allocation13 [shape = 'u8[4096]{0}', space=vmem, size = 0x1000, scoped, tag = 'output window, operand 0, single buffered']
    %16 = vsyncpa [#allocation3], 0
    %17 = vsyncpa [#allocation6], 0
    %18 = vsyncpa [#allocation9], 0
    %19 = vsyncpa [#allocation12], 0
    %20 = vsyncpa [#allocation4], 0
    // Predicated region
    $region2: #{tpu_custom_call.1} parent=1 // pred_check
      _
    $region3: #{tpu_custom_call.1} parent=1 // pred_check_branch
      %22 = sbr.rel (0) target = $region5
    $region4: #{tpu_custom_call.1} parent=1 // pred_region
      %s24 = ssub.s32 128, 128
      %25 = vsyncadd [#allocation3], %s24
      %s27 = sshll.u32 [#allocation2], 4
      %s28 = int_to_ptr.vmem [resolvable:$true] %s27
      %30 = dma.hbm_to_vmem [thread:$0]  %s0, 128, %s28, [#allocation3]
    $region5: #{tpu_custom_call.1} parent=1 // pred_fallthru
      _
    // Predicated region
    $region6: #{tpu_custom_call.1} parent=1 // pred_check
      _
    $region7: #{tpu_custom_call.1} parent=1 // pred_check_branch
      %32 = sbr.rel (0) target = $region9
    $region8: #{tpu_custom_call.1} parent=1 // pred_region
      %s34 = ssub.s32 4096, 4096
      %35 = vsyncadd [#allocation6], %s34
      %s36 = sshll.u32 [#allocation5], 4
      %s37 = int_to_ptr.vmem [resolvable:$true] %s36
      %42 = dma.hbm_to_vmem [thread:$0]  %s1, 4096, %s37, [#allocation6], 256, 256, 16
    $region9: #{tpu_custom_call.1} parent=1 // pred_fallthru
      _
    // Predicated region
    $region10: #{tpu_custom_call.1} parent=1 // pred_check
      _
    $region11: #{tpu_custom_call.1} parent=1 // pred_check_branch
      %44 = sbr.rel (0) target = $region13
    $region12: #{tpu_custom_call.1} parent=1 // pred_region
      _
    $region13: #{tpu_custom_call.1} parent=1 // pred_fallthru
      _
    // Predicated region
    $region14: #{tpu_custom_call.1} parent=1 // pred_check
      _
    $region15: #{tpu_custom_call.1} parent=1 // pred_check_branch
      %46 = sbr.rel (0) target = $region17
    $region16: #{tpu_custom_call.1} parent=1 // pred_region
      %s48 = ssub.s32 16384, 16384
      %49 = vsyncadd [#allocation6], %s48
      %s50 = sshll.u32 [#allocation7], 4
      %s51 = int_to_ptr.vmem [resolvable:$true] %s50
      %56 = dma.hbm_to_vmem [thread:$0]  %s3, 16384, %s51, [#allocation6], 256, 256, 16
    $region17: #{tpu_custom_call.1} parent=1 // pred_fallthru
      _
    // Predicated region
    $region18: #{tpu_custom_call.1} parent=1 // pred_check
      _
    $region19: #{tpu_custom_call.1} parent=1 // pred_check_branch
      %58 = sbr.rel (0) target = $region21
    $region20: #{tpu_custom_call.1} parent=1 // pred_region
      _
    $region21: #{tpu_custom_call.1} parent=1 // pred_fallthru
      _
    // Predicated region
    $region22: #{tpu_custom_call.1} parent=1 // pred_check
      _
    $region23: #{tpu_custom_call.1} parent=1 // pred_check_branch
      %60 = sbr.rel (0) target = $region25
    $region24: #{tpu_custom_call.1} parent=1 // pred_region
      %s62 = ssub.s32 16384, 16384
      %63 = vsyncadd [#allocation9], %s62
      %s64 = sshll.u32 [#allocation8], 4
      %s65 = int_to_ptr.vmem [resolvable:$true] %s64
      %70 = dma.hbm_to_vmem [thread:$0]  %s5, 16384, %s65, [#allocation9], 256, 256, 16
    $region25: #{tpu_custom_call.1} parent=1 // pred_fallthru
      _
    // Predicated region
    $region26: #{tpu_custom_call.1} parent=1 // pred_check
      _
    $region27: #{tpu_custom_call.1} parent=1 // pred_check_branch
      %72 = sbr.rel (0) target = $region29
    $region28: #{tpu_custom_call.1} parent=1 // pred_region
      _
    $region29: #{tpu_custom_call.1} parent=1 // pred_fallthru
      _
    // Predicated region
    $region30: #{tpu_custom_call.1} parent=1 // pred_check
      _
    $region31: #{tpu_custom_call.1} parent=1 // pred_check_branch
      %74 = sbr.rel (0) target = $region33
    $region32: #{tpu_custom_call.1} parent=1 // pred_region
      %s76 = ssub.s32 8192, 8192
      %77 = vsyncadd [#allocation9], %s76
      %s78 = sshll.u32 [#allocation10], 4
      %s79 = int_to_ptr.vmem [resolvable:$true] %s78
      %84 = dma.hbm_to_vmem [thread:$0]  %s7, 8192, %s79, [#allocation9], 128, 128, 8
    $region33: #{tpu_custom_call.1} parent=1 // pred_fallthru
      _
    // Predicated region
    $region34: #{tpu_custom_call.1} parent=1 // pred_check
      _
    $region35: #{tpu_custom_call.1} parent=1 // pred_check_branch
      %86 = sbr.rel (0) target = $region37
    $region36: #{tpu_custom_call.1} parent=1 // pred_region
      _
    $region37: #{tpu_custom_call.1} parent=1 // pred_fallthru
      _
    // Predicated region
    $region38: #{tpu_custom_call.1} parent=1 // pred_check
      _
    $region39: #{tpu_custom_call.1} parent=1 // pred_check_branch
      %88 = sbr.rel (0) target = $region41
    $region40: #{tpu_custom_call.1} parent=1 // pred_region
      %s90 = ssub.s32 2048, 2048
      %91 = vsyncadd [#allocation12], %s90
      %s92 = sshll.u32 [#allocation11], 4
      %s93 = int_to_ptr.vmem [resolvable:$true] %s92
      %98 = dma.hbm_to_vmem [thread:$0]  %s9, 2048, %s93, [#allocation12], 64, 64, 4
    $region41: #{tpu_custom_call.1} parent=1 // pred_fallthru
      _
    // Predicated region
    $region42: #{tpu_custom_call.1} parent=1 // pred_check
      _
    $region43: #{tpu_custom_call.1} parent=1 // pred_check_branch
      %100 = sbr.rel (0) target = $region45
    $region44: #{tpu_custom_call.1} parent=1 // pred_region
      _
    $region45: #{tpu_custom_call.1} parent=1 // pred_fallthru
      _
    // Predicated region
    $region46: #{tpu_custom_call.1} parent=1 // pred_check
      _
    $region47: #{tpu_custom_call.1} parent=1 // pred_check_branch
      %102 = sbr.rel (0) target = $region49
    $region48: #{tpu_custom_call.1} parent=1 // pred_region
      %103 = dma.done [#allocation3], 128
    $region49: #{tpu_custom_call.1} parent=1 // pred_fallthru
      _
    // Predicated region
    $region50: #{tpu_custom_call.1} parent=1 // pred_check
      _
    $region51: #{tpu_custom_call.1} parent=1 // pred_check_branch
      %105 = sbr.rel (0) target = $region53
    $region52: #{tpu_custom_call.1} parent=1 // pred_region
      %106 = dma.done [#allocation6], 4096
    $region53: #{tpu_custom_call.1} parent=1 // pred_fallthru
      _
    // Predicated region
    $region54: #{tpu_custom_call.1} parent=1 // pred_check
      _
    $region55: #{tpu_custom_call.1} parent=1 // pred_check_branch
      %108 = sbr.rel (0) target = $region57
    $region56: #{tpu_custom_call.1} parent=1 // pred_region
      %109 = dma.done [#allocation6], 16384
    $region57: #{tpu_custom_call.1} parent=1 // pred_fallthru
      _
    // Predicated region
    $region58: #{tpu_custom_call.1} parent=1 // pred_check
      _
    $region59: #{tpu_custom_call.1} parent=1 // pred_check_branch
      %111 = sbr.rel (0) target = $region61
    $region60: #{tpu_custom_call.1} parent=1 // pred_region
      %112 = dma.done [#allocation9], 16384
    $region61: #{tpu_custom_call.1} parent=1 // pred_fallthru
      _
    // Predicated region
    $region62: #{tpu_custom_call.1} parent=1 // pred_check
      _
    $region63: #{tpu_custom_call.1} parent=1 // pred_check_branch
      %114 = sbr.rel (0) target = $region65
    $region64: #{tpu_custom_call.1} parent=1 // pred_region
      %115 = dma.done [#allocation9], 8192
    $region65: #{tpu_custom_call.1} parent=1 // pred_fallthru
      _
    // Predicated region
    $region66: #{tpu_custom_call.1} parent=1 // pred_check
      _
    $region67: #{tpu_custom_call.1} parent=1 // pred_check_branch
      %117 = sbr.rel (0) target = $region69
    $region68: #{tpu_custom_call.1} parent=1 // pred_region
      %118 = dma.done [#allocation12], 2048
    $region69: #{tpu_custom_call.1} parent=1 // pred_fallthru
      _
    %v120 = vld [vmem:[#allocation2] sm:$0xff]
    %v121 = vpack.c.bf16 %v120, %v120
    %v122 = vld [vmem:[#allocation5] sm:$0xff]
    %v123 = vld [vmem:[#allocation5 + $0x8] sm:$0xff]
    %v124 = vld [vmem:[#allocation5 + $0x10] sm:$0xff]
    %v125 = vld [vmem:[#allocation5 + $0x18] sm:$0xff]
    %v126 = vld [vmem:[#allocation5 + $0x20] sm:$0xff]
    %v127 = vld [vmem:[#allocation5 + $0x28] sm:$0xff]
    %v128 = vld [vmem:[#allocation5 + $0x30] sm:$0xff]
    %v129 = vld [vmem:[#allocation5 + $0x38] sm:$0xff]
    %v130 = vld [vmem:[#allocation5 + $0x40] sm:$0xff]
    %v131 = vld [vmem:[#allocation5 + $0x48] sm:$0xff]
    %v132 = vld [vmem:[#allocation5 + $0x50] sm:$0xff]
    %v133 = vld [vmem:[#allocation5 + $0x58] sm:$0xff]
    %v134 = vld [vmem:[#allocation5 + $0x60] sm:$0xff]
    %v135 = vld [vmem:[#allocation5 + $0x68] sm:$0xff]
    %v136 = vld [vmem:[#allocation5 + $0x70] sm:$0xff]
    %v137 = vld [vmem:[#allocation5 + $0x78] sm:$0xff]
    %v138 = vld [vmem:[#allocation5 + $0x80] sm:$0xff]
    %v139 = vld [vmem:[#allocation5 + $0x88] sm:$0xff]
    %v140 = vld [vmem:[#allocation5 + $0x90] sm:$0xff]
    %v141 = vld [vmem:[#allocation5 + $0x98] sm:$0xff]
    %v142 = vld [vmem:[#allocation5 + $0xa0] sm:$0xff]
    %v143 = vld [vmem:[#allocation5 + $0xa8] sm:$0xff]
    %v144 = vld [vmem:[#allocation5 + $0xb0] sm:$0xff]
    %v145 = vld [vmem:[#allocation5 + $0xb8] sm:$0xff]
    %v146 = vld [vmem:[#allocation5 + $0xc0] sm:$0xff]
    %v147 = vld [vmem:[#allocation5 + $0xc8] sm:$0xff]
    %v148 = vld [vmem:[#allocation5 + $0xd0] sm:$0xff]
    %v149 = vld [vmem:[#allocation5 + $0xd8] sm:$0xff]
    %v150 = vld [vmem:[#allocation5 + $0xe0] sm:$0xff]
    %v151 = vld [vmem:[#allocation5 + $0xe8] sm:$0xff]
    %v152 = vld [vmem:[#allocation5 + $0xf0] sm:$0xff]
    %v153 = vld [vmem:[#allocation5 + $0xf8] sm:$0xff]
    %v154 = vld [vmem:[%s2] sm:$0xf]
    %v156 = vlaneseq
    %v157 = vshrl.u32 %v156, 7
    %v158 = vsub.s32 0, %v157
    %v159 = vrot.slane %v154, %v158
    %v160 = vlaneseq
    %v161 = vshrl.u32 %v160, 7
    %v162 = vsub.s32 1, %v161
    %v163 = vrot.slane %v154, %v162
    %v164 = vlaneseq
    %v165 = vshrl.u32 %v164, 7
    %v166 = vsub.s32 2, %v165
    %v167 = vrot.slane %v154, %v166
    %v168 = vlaneseq
    %v169 = vshrl.u32 %v168, 7
    %v170 = vsub.s32 3, %v169
    %v171 = vrot.slane %v154, %v170
    %v208 = vunpack.c.l.b16 %v122
    %v209 = vunpack.c.h.b16 %v122
    %v210 = vunpack.c.l.b16 %v123
    %v211 = vunpack.c.h.b16 %v123
    %v212 = vunpack.c.l.b16 %v124
    %v213 = vunpack.c.h.b16 %v124
    %v214 = vunpack.c.l.b16 %v125
    %v215 = vunpack.c.h.b16 %v125
    %v216 = vunpack.c.l.b16 %v126
    %v217 = vunpack.c.h.b16 %v126
    %v218 = vunpack.c.l.b16 %v127
    %v219 = vunpack.c.h.b16 %v127
    %v220 = vunpack.c.l.b16 %v128
    %v221 = vunpack.c.h.b16 %v128
    %v222 = vunpack.c.l.b16 %v129
    %v223 = vunpack.c.h.b16 %v129
    %v224 = vunpack.c.l.b16 %v130
    %v225 = vunpack.c.h.b16 %v130
    %v226 = vunpack.c.l.b16 %v131
    %v227 = vunpack.c.h.b16 %v131
    %v228 = vunpack.c.l.b16 %v132
    %v229 = vunpack.c.h.b16 %v132
    %v230 = vunpack.c.l.b16 %v133
    %v231 = vunpack.c.h.b16 %v133
    %v232 = vunpack.c.l.b16 %v134
    %v233 = vunpack.c.h.b16 %v134
    %v234 = vunpack.c.l.b16 %v135
    %v235 = vunpack.c.h.b16 %v135
    %v236 = vunpack.c.l.b16 %v136
    %v237 = vunpack.c.h.b16 %v136
    %v238 = vunpack.c.l.b16 %v137
    %v239 = vunpack.c.h.b16 %v137
    %v240 = vunpack.c.l.b16 %v138
    %v241 = vunpack.c.h.b16 %v138
    %v242 = vunpack.c.l.b16 %v139
    %v243 = vunpack.c.h.b16 %v139
    %v244 = vunpack.c.l.b16 %v140
    %v245 = vunpack.c.h.b16 %v140
    %v246 = vunpack.c.l.b16 %v141
    %v247 = vunpack.c.h.b16 %v141
    %v248 = vunpack.c.l.b16 %v142
    %v249 = vunpack.c.h.b16 %v142
    %v250 = vunpack.c.l.b16 %v143
    %v251 = vunpack.c.h.b16 %v143
    %v252 = vunpack.c.l.b16 %v144
    %v253 = vunpack.c.h.b16 %v144
    %v254 = vunpack.c.l.b16 %v145
    %v255 = vunpack.c.h.b16 %v145
    %v256 = vunpack.c.l.b16 %v146
    %v257 = vunpack.c.h.b16 %v146
    %v258 = vunpack.c.l.b16 %v147
    %v259 = vunpack.c.h.b16 %v147
    %v260 = vunpack.c.l.b16 %v148
    %v261 = vunpack.c.h.b16 %v148
    %v262 = vunpack.c.l.b16 %v149
    %v263 = vunpack.c.h.b16 %v149
    %v264 = vunpack.c.l.b16 %v150
    %v265 = vunpack.c.h.b16 %v150
    %v266 = vunpack.c.l.b16 %v151
    %v267 = vunpack.c.h.b16 %v151
    %v268 = vunpack.c.l.b16 %v152
    %v269 = vunpack.c.h.b16 %v152
    %v270 = vunpack.c.l.b16 %v153
    %v271 = vunpack.c.h.b16 %v153
    %v272 = vpack.c.b16 %v212, %v208
    %v273 = vpack.c.b16 %v213, %v209
    %v274 = vpack.c.b16 %v214, %v210
    %v275 = vpack.c.b16 %v215, %v211
    %v276 = vpack.c.b16 %v220, %v216
    %v277 = vpack.c.b16 %v221, %v217
    %v278 = vpack.c.b16 %v222, %v218
    %v279 = vpack.c.b16 %v223, %v219
    %v280 = vpack.c.b16 %v228, %v224
    %v281 = vpack.c.b16 %v229, %v225
    %v282 = vpack.c.b16 %v230, %v226
    %v283 = vpack.c.b16 %v231, %v227
    %v284 = vpack.c.b16 %v236, %v232
    %v285 = vpack.c.b16 %v237, %v233
    %v286 = vpack.c.b16 %v238, %v234
    %v287 = vpack.c.b16 %v239, %v235
    %v288 = vpack.c.b16 %v244, %v240
    %v289 = vpack.c.b16 %v245, %v241
    %v290 = vpack.c.b16 %v246, %v242
    %v291 = vpack.c.b16 %v247, %v243
    %v292 = vpack.c.b16 %v252, %v248
    %v293 = vpack.c.b16 %v253, %v249
    %v294 = vpack.c.b16 %v254, %v250
    %v295 = vpack.c.b16 %v255, %v251
    %v296 = vpack.c.b16 %v260, %v256
    %v297 = vpack.c.b16 %v261, %v257
    %v298 = vpack.c.b16 %v262, %v258
    %v299 = vpack.c.b16 %v263, %v259
    %v300 = vpack.c.b16 %v268, %v264
    %v301 = vpack.c.b16 %v269, %v265
    %v302 = vpack.c.b16 %v270, %v266
    %v303 = vpack.c.b16 %v271, %v267
    %336 = vmatprep.subr.bf16.mxu0 %v273
    %337 = vmatpush1.bf16.msra.mxu0 %v272
    %338 = vmatprep.subr.bf16.mxu0 %v277
    %339 = vmatpush1.bf16.msra.mxu0 %v276
    %340 = vmatprep.subr.bf16.mxu0 %v281
    %341 = vmatpush1.bf16.msra.mxu0 %v280
    %342 = vmatprep.subr.bf16.mxu0 %v285
    %343 = vmatpush1.bf16.msra.mxu0 %v284
    %344 = vmatprep.subr.bf16.mxu0 %v289
    %345 = vmatpush1.bf16.msra.mxu0 %v288
    %346 = vmatprep.subr.bf16.mxu0 %v293
    %347 = vmatpush1.bf16.msra.mxu0 %v292
    %348 = vmatprep.subr.bf16.mxu0 %v297
    %349 = vmatpush1.bf16.msra.mxu0 %v296
    %350 = vmatprep.subr.bf16.mxu0 %v301
    %351 = vmatpush1.bf16.msra.mxu0 %v300
    %352 = vmatprep.subr.bf16.mxu0 0
    %353 = vmatpush1.bf16.msra.mxu0 0
    %354 = vmatprep.subr.bf16.mxu0 0
    %355 = vmatpush1.bf16.msra.mxu0 0
    %356 = vmatprep.subr.bf16.mxu0 0
    %357 = vmatpush1.bf16.msra.mxu0 0
    %358 = vmatprep.subr.bf16.mxu0 0
    %359 = vmatpush1.bf16.msra.mxu0 0
    %360 = vmatprep.subr.bf16.mxu0 0
    %361 = vmatpush1.bf16.msra.mxu0 0
    %362 = vmatprep.subr.bf16.mxu0 0
    %363 = vmatpush1.bf16.msra.mxu0 0
    %364 = vmatprep.subr.bf16.mxu0 0
    %365 = vmatpush1.bf16.msra.mxu0 0
    %366 = vmatprep.subr.bf16.mxu0 0
    %367 = vmatpush1.bf16.msra.mxu0 0
    %368 = vmatprep.mubr.bf16.mxu0 0
    %369 = vmatmul.mubr.bf16.gmra.mrb[0].mxu0 %v121
    %v370 = vpop.f32.mrb[0].mxu0
    %v371 = vadd.f32 %v159, %v370
    %v372 = vpop.f32.mrb[0].mxu0
    %v373 = vadd.f32 %v163, %v372
    %v374 = vpop.f32.mrb[0].mxu0
    %v375 = vpop.f32.mrb[0].mxu0
    %376 = vdwg.mxu0
    %377 = vmatprep.subr.bf16.mxu0 %v275
    %378 = vmatpush1.bf16.msra.mxu0 %v274
    %379 = vmatprep.subr.bf16.mxu0 %v279
    %380 = vmatpush1.bf16.msra.mxu0 %v278
    %381 = vmatprep.subr.bf16.mxu0 %v283
    %382 = vmatpush1.bf16.msra.mxu0 %v282
    %383 = vmatprep.subr.bf16.mxu0 %v287
    %384 = vmatpush1.bf16.msra.mxu0 %v286
    %385 = vmatprep.subr.bf16.mxu0 %v291
    %386 = vmatpush1.bf16.msra.mxu0 %v290
    %387 = vmatprep.subr.bf16.mxu0 %v295
    %388 = vmatpush1.bf16.msra.mxu0 %v294
    %389 = vmatprep.subr.bf16.mxu0 %v299
    %390 = vmatpush1.bf16.msra.mxu0 %v298
    %391 = vmatprep.subr.bf16.mxu0 %v303
    %392 = vmatpush1.bf16.msra.mxu0 %v302
    %393 = vmatprep.subr.bf16.mxu0 0
    %394 = vmatpush1.bf16.msra.mxu0 0
    %395 = vmatprep.subr.bf16.mxu0 0
    %396 = vmatpush1.bf16.msra.mxu0 0
    %397 = vmatprep.subr.bf16.mxu0 0
    %398 = vmatpush1.bf16.msra.mxu0 0
    %399 = vmatprep.subr.bf16.mxu0 0
    %400 = vmatpush1.bf16.msra.mxu0 0
    %401 = vmatprep.subr.bf16.mxu0 0
    %402 = vmatpush1.bf16.msra.mxu0 0
    %403 = vmatprep.subr.bf16.mxu0 0
    %404 = vmatpush1.bf16.msra.mxu0 0
    %405 = vmatprep.subr.bf16.mxu0 0
    %406 = vmatpush1.bf16.msra.mxu0 0
    %407 = vmatprep.subr.bf16.mxu0 0
    %408 = vmatpush1.bf16.msra.mxu0 0
    %409 = vmatprep.mubr.bf16.mxu0 0
    %410 = vmatmul.mubr.bf16.gmra.mrb[0].mxu0 %v121
    %v411 = vpop.f32.mrb[0].mxu0
    %v412 = vadd.f32 %v167, %v411
    %v413 = vpop.f32.mrb[0].mxu0
    %v414 = vadd.f32 %v171, %v413
    %v415 = vpop.f32.mrb[0].mxu0
    %v416 = vpop.f32.mrb[0].mxu0
    %417 = vdwg.mxu0
    %v418 = vmax.f32 %v371, 0.0
    %v419 = vmax.f32 %v373, 0.0
    %v420 = vmax.f32 %v412, 0.0
    %v421 = vmax.f32 %v414, 0.0
    %v422 = vpack.c.bf16 %v418, %v418
    %v423 = vpack.c.bf16 %v419, %v419
    %v424 = vpack.c.bf16 %v420, %v420
    %v425 = vpack.c.bf16 %v421, %v421
    %v426 = vld [vmem:[#allocation7] sm:$0xff]
    %v427 = vld [vmem:[#allocation7 + $0x8] sm:$0xff]
    %v428 = vld [vmem:[#allocation7 + $0x10] sm:$0xff]
    %v429 = vld [vmem:[#allocation7 + $0x18] sm:$0xff]
    %v430 = vld [vmem:[#allocation7 + $0x20] sm:$0xff]
    %v431 = vld [vmem:[#allocation7 + $0x28] sm:$0xff]
    %v432 = vld [vmem:[#allocation7 + $0x30] sm:$0xff]
    %v433 = vld [vmem:[#allocation7 + $0x38] sm:$0xff]
    %v434 = vld [vmem:[#allocation7 + $0x40] sm:$0xff]
    %v435 = vld [vmem:[#allocation7 + $0x48] sm:$0xff]
    %v436 = vld [vmem:[#allocation7 + $0x50] sm:$0xff]
    %v437 = vld [vmem:[#allocation7 + $0x58] sm:$0xff]
    %v438 = vld [vmem:[#allocation7 + $0x60] sm:$0xff]
    %v439 = vld [vmem:[#allocation7 + $0x68] sm:$0xff]
    %v440 = vld [vmem:[#allocation7 + $0x70] sm:$0xff]
    %v441 = vld [vmem:[#allocation7 + $0x78] sm:$0xff]
    %v442 = vld [vmem:[#allocation7 + $0x80] sm:$0xff]
    %v443 = vld [vmem:[#allocation7 + $0x88] sm:$0xff]
    %v444 = vld [vmem:[#allocation7 + $0x90] sm:$0xff]
    %v445 = vld [vmem:[#allocation7 + $0x98] sm:$0xff]
    %v446 = vld [vmem:[#allocation7 + $0xa0] sm:$0xff]
    %v447 = vld [vmem:[#allocation7 + $0xa8] sm:$0xff]
    %v448 = vld [vmem:[#allocation7 + $0xb0] sm:$0xff]
    %v449 = vld [vmem:[#allocation7 + $0xb8] sm:$0xff]
    %v450 = vld [vmem:[#allocation7 + $0xc0] sm:$0xff]
    %v451 = vld [vmem:[#allocation7 + $0xc8] sm:$0xff]
    %v452 = vld [vmem:[#allocation7 + $0xd0] sm:$0xff]
    %v453 = vld [vmem:[#allocation7 + $0xd8] sm:$0xff]
    %v454 = vld [vmem:[#allocation7 + $0xe0] sm:$0xff]
    %v455 = vld [vmem:[#allocation7 + $0xe8] sm:$0xff]
    %v456 = vld [vmem:[#allocation7 + $0xf0] sm:$0xff]
    %v457 = vld [vmem:[#allocation7 + $0xf8] sm:$0xff]
    %v458 = vld [vmem:[#allocation7 + $0x100] sm:$0xff]
    %v459 = vld [vmem:[#allocation7 + $0x108] sm:$0xff]
    %v460 = vld [vmem:[#allocation7 + $0x110] sm:$0xff]
    %v461 = vld [vmem:[#allocation7 + $0x118] sm:$0xff]
    %v462 = vld [vmem:[#allocation7 + $0x120] sm:$0xff]
    %v463 = vld [vmem:[#allocation7 + $0x128] sm:$0xff]
    %v464 = vld [vmem:[#allocation7 + $0x130] sm:$0xff]
    %v465 = vld [vmem:[#allocation7 + $0x138] sm:$0xff]
    %v466 = vld [vmem:[#allocation7 + $0x140] sm:$0xff]
    %v467 = vld [vmem:[#allocation7 + $0x148] sm:$0xff]
    %v468 = vld [vmem:[#allocation7 + $0x150] sm:$0xff]
    %v469 = vld [vmem:[#allocation7 + $0x158] sm:$0xff]
    %v470 = vld [vmem:[#allocation7 + $0x160] sm:$0xff]
    %v471 = vld [vmem:[#allocation7 + $0x168] sm:$0xff]
    %v472 = vld [vmem:[#allocation7 + $0x170] sm:$0xff]
    %v473 = vld [vmem:[#allocation7 + $0x178] sm:$0xff]
    %v474 = vld [vmem:[#allocation7 + $0x180] sm:$0xff]
    %v475 = vld [vmem:[#allocation7 + $0x188] sm:$0xff]
    %v476 = vld [vmem:[#allocation7 + $0x190] sm:$0xff]
    %v477 = vld [vmem:[#allocation7 + $0x198] sm:$0xff]
    %v478 = vld [vmem:[#allocation7 + $0x1a0] sm:$0xff]
    %v479 = vld [vmem:[#allocation7 + $0x1a8] sm:$0xff]
    %v480 = vld [vmem:[#allocation7 + $0x1b0] sm:$0xff]
    %v481 = vld [vmem:[#allocation7 + $0x1b8] sm:$0xff]
    %v482 = vld [vmem:[#allocation7 + $0x1c0] sm:$0xff]
    %v483 = vld [vmem:[#allocation7 + $0x1c8] sm:$0xff]
    %v484 = vld [vmem:[#allocation7 + $0x1d0] sm:$0xff]
    %v485 = vld [vmem:[#allocation7 + $0x1d8] sm:$0xff]
    %v486 = vld [vmem:[#allocation7 + $0x1e0] sm:$0xff]
    %v487 = vld [vmem:[#allocation7 + $0x1e8] sm:$0xff]
    %v488 = vld [vmem:[#allocation7 + $0x1f0] sm:$0xff]
    %v489 = vld [vmem:[#allocation7 + $0x1f8] sm:$0xff]
    %v490 = vld [vmem:[#allocation7 + $0x200] sm:$0xff]
    %v491 = vld [vmem:[#allocation7 + $0x208] sm:$0xff]
    %v492 = vld [vmem:[#allocation7 + $0x210] sm:$0xff]
    %v493 = vld [vmem:[#allocation7 + $0x218] sm:$0xff]
    %v494 = vld [vmem:[#allocation7 + $0x220] sm:$0xff]
    %v495 = vld [vmem:[#allocation7 + $0x228] sm:$0xff]
    %v496 = vld [vmem:[#allocation7 + $0x230] sm:$0xff]
    %v497 = vld [vmem:[#allocation7 + $0x238] sm:$0xff]
    %v498 = vld [vmem:[#allocation7 + $0x240] sm:$0xff]
    %v499 = vld [vmem:[#allocation7 + $0x248] sm:$0xff]
    %v500 = vld [vmem:[#allocation7 + $0x250] sm:$0xff]
    %v501 = vld [vmem:[#allocation7 + $0x258] sm:$0xff]
    %v502 = vld [vmem:[#allocation7 + $0x260] sm:$0xff]
    %v503 = vld [vmem:[#allocation7 + $0x268] sm:$0xff]
    %v504 = vld [vmem:[#allocation7 + $0x270] sm:$0xff]
    %v505 = vld [vmem:[#allocation7 + $0x278] sm:$0xff]
    %v506 = vld [vmem:[#allocation7 + $0x280] sm:$0xff]
    %v507 = vld [vmem:[#allocation7 + $0x288] sm:$0xff]
    %v508 = vld [vmem:[#allocation7 + $0x290] sm:$0xff]
    %v509 = vld [vmem:[#allocation7 + $0x298] sm:$0xff]
    %v510 = vld [vmem:[#allocation7 + $0x2a0] sm:$0xff]
    %v511 = vld [vmem:[#allocation7 + $0x2a8] sm:$0xff]
    %v512 = vld [vmem:[#allocation7 + $0x2b0] sm:$0xff]
    %v513 = vld [vmem:[#allocation7 + $0x2b8] sm:$0xff]
    %v514 = vld [vmem:[#allocation7 + $0x2c0] sm:$0xff]
    %v515 = vld [vmem:[#allocation7 + $0x2c8] sm:$0xff]
    %v516 = vld [vmem:[#allocation7 + $0x2d0] sm:$0xff]
    %v517 = vld [vmem:[#allocation7 + $0x2d8] sm:$0xff]
    %v518 = vld [vmem:[#allocation7 + $0x2e0] sm:$0xff]
    %v519 = vld [vmem:[#allocation7 + $0x2e8] sm:$0xff]
    %v520 = vld [vmem:[#allocation7 + $0x2f0] sm:$0xff]
    %v521 = vld [vmem:[#allocation7 + $0x2f8] sm:$0xff]
    %v522 = vld [vmem:[#allocation7 + $0x300] sm:$0xff]
    %v523 = vld [vmem:[#allocation7 + $0x308] sm:$0xff]
    %v524 = vld [vmem:[#allocation7 + $0x310] sm:$0xff]
    %v525 = vld [vmem:[#allocation7 + $0x318] sm:$0xff]
    %v526 = vld [vmem:[#allocation7 + $0x320] sm:$0xff]
    %v527 = vld [vmem:[#allocation7 + $0x328] sm:$0xff]
    %v528 = vld [vmem:[#allocation7 + $0x330] sm:$0xff]
    %v529 = vld [vmem:[#allocation7 + $0x338] sm:$0xff]
    %v530 = vld [vmem:[#allocation7 + $0x340] sm:$0xff]
    %v531 = vld [vmem:[#allocation7 + $0x348] sm:$0xff]
    %v532 = vld [vmem:[#allocation7 + $0x350] sm:$0xff]
    %v533 = vld [vmem:[#allocation7 + $0x358] sm:$0xff]
    %v534 = vld [vmem:[#allocation7 + $0x360] sm:$0xff]
    %v535 = vld [vmem:[#allocation7 + $0x368] sm:$0xff]
    %v536 = vld [vmem:[#allocation7 + $0x370] sm:$0xff]
    %v537 = vld [vmem:[#allocation7 + $0x378] sm:$0xff]
    %v538 = vld [vmem:[#allocation7 + $0x380] sm:$0xff]
    %v539 = vld [vmem:[#allocation7 + $0x388] sm:$0xff]
    %v540 = vld [vmem:[#allocation7 + $0x390] sm:$0xff]
    %v541 = vld [vmem:[#allocation7 + $0x398] sm:$0xff]
    %v542 = vld [vmem:[#allocation7 + $0x3a0] sm:$0xff]
    %v543 = vld [vmem:[#allocation7 + $0x3a8] sm:$0xff]
    %v544 = vld [vmem:[#allocation7 + $0x3b0] sm:$0xff]
    %v545 = vld [vmem:[#allocation7 + $0x3b8] sm:$0xff]
    %v546 = vld [vmem:[#allocation7 + $0x3c0] sm:$0xff]
    %v547 = vld [vmem:[#allocation7 + $0x3c8] sm:$0xff]
    %v548 = vld [vmem:[#allocation7 + $0x3d0] sm:$0xff]
    %v549 = vld [vmem:[#allocation7 + $0x3d8] sm:$0xff]
    %v550 = vld [vmem:[#allocation7 + $0x3e0] sm:$0xff]
    %v551 = vld [vmem:[#allocation7 + $0x3e8] sm:$0xff]
    %v552 = vld [vmem:[#allocation7 + $0x3f0] sm:$0xff]
    %v553 = vld [vmem:[#allocation7 + $0x3f8] sm:$0xff]
    %v554 = vld [vmem:[%s4] sm:$0xf]
    %v556 = vlaneseq
    %v557 = vshrl.u32 %v556, 7
    %v558 = vsub.s32 0, %v557
    %v559 = vrot.slane %v554, %v558
    %v560 = vlaneseq
    %v561 = vshrl.u32 %v560, 7
    %v562 = vsub.s32 1, %v561
    %v563 = vrot.slane %v554, %v562
    %v564 = vlaneseq
    %v565 = vshrl.u32 %v564, 7
    %v566 = vsub.s32 2, %v565
    %v567 = vrot.slane %v554, %v566
    %v568 = vlaneseq
    %v569 = vshrl.u32 %v568, 7
    %v570 = vsub.s32 3, %v569
    %v571 = vrot.slane %v554, %v570
    %v704 = vunpack.c.l.b16 %v426
    %v705 = vunpack.c.h.b16 %v426
    %v706 = vunpack.c.l.b16 %v427
    %v707 = vunpack.c.h.b16 %v427
    %v708 = vunpack.c.l.b16 %v428
    %v709 = vunpack.c.h.b16 %v428
    %v710 = vunpack.c.l.b16 %v429
    %v711 = vunpack.c.h.b16 %v429
    %v712 = vunpack.c.l.b16 %v430
    %v713 = vunpack.c.h.b16 %v430
    %v714 = vunpack.c.l.b16 %v431
    %v715 = vunpack.c.h.b16 %v431
    %v716 = vunpack.c.l.b16 %v432
    %v717 = vunpack.c.h.b16 %v432
    %v718 = vunpack.c.l.b16 %v433
    %v719 = vunpack.c.h.b16 %v433
    %v720 = vunpack.c.l.b16 %v434
    %v721 = vunpack.c.h.b16 %v434
    %v722 = vunpack.c.l.b16 %v435
    %v723 = vunpack.c.h.b16 %v435
    %v724 = vunpack.c.l.b16 %v436
    %v725 = vunpack.c.h.b16 %v436
    %v726 = vunpack.c.l.b16 %v437
    %v727 = vunpack.c.h.b16 %v437
    %v728 = vunpack.c.l.b16 %v438
    %v729 = vunpack.c.h.b16 %v438
    %v730 = vunpack.c.l.b16 %v439
    %v731 = vunpack.c.h.b16 %v439
    %v732 = vunpack.c.l.b16 %v440
    %v733 = vunpack.c.h.b16 %v440
    %v734 = vunpack.c.l.b16 %v441
    %v735 = vunpack.c.h.b16 %v441
    %v736 = vunpack.c.l.b16 %v442
    %v737 = vunpack.c.h.b16 %v442
    %v738 = vunpack.c.l.b16 %v443
    %v739 = vunpack.c.h.b16 %v443
    %v740 = vunpack.c.l.b16 %v444
    %v741 = vunpack.c.h.b16 %v444
    %v742 = vunpack.c.l.b16 %v445
    %v743 = vunpack.c.h.b16 %v445
    %v744 = vunpack.c.l.b16 %v446
    %v745 = vunpack.c.h.b16 %v446
    %v746 = vunpack.c.l.b16 %v447
    %v747 = vunpack.c.h.b16 %v447
    %v748 = vunpack.c.l.b16 %v448
    %v749 = vunpack.c.h.b16 %v448
    %v750 = vunpack.c.l.b16 %v449
    %v751 = vunpack.c.h.b16 %v449
    %v752 = vunpack.c.l.b16 %v450
    %v753 = vunpack.c.h.b16 %v450
    %v754 = vunpack.c.l.b16 %v451
    %v755 = vunpack.c.h.b16 %v451
    %v756 = vunpack.c.l.b16 %v452
    %v757 = vunpack.c.h.b16 %v452
    %v758 = vunpack.c.l.b16 %v453
    %v759 = vunpack.c.h.b16 %v453
    %v760 = vunpack.c.l.b16 %v454
    %v761 = vunpack.c.h.b16 %v454
    %v762 = vunpack.c.l.b16 %v455
    %v763 = vunpack.c.h.b16 %v455
    %v764 = vunpack.c.l.b16 %v456
    %v765 = vunpack.c.h.b16 %v456
    %v766 = vunpack.c.l.b16 %v457
    %v767 = vunpack.c.h.b16 %v457
    %v768 = vunpack.c.l.b16 %v458
    %v769 = vunpack.c.h.b16 %v458
    %v770 = vunpack.c.l.b16 %v459
    %v771 = vunpack.c.h.b16 %v459
    %v772 = vunpack.c.l.b16 %v460
    %v773 = vunpack.c.h.b16 %v460
    %v774 = vunpack.c.l.b16 %v461
    %v775 = vunpack.c.h.b16 %v461
    %v776 = vunpack.c.l.b16 %v462
    %v777 = vunpack.c.h.b16 %v462
    %v778 = vunpack.c.l.b16 %v463
    %v779 = vunpack.c.h.b16 %v463
    %v780 = vunpack.c.l.b16 %v464
    %v781 = vunpack.c.h.b16 %v464
    %v782 = vunpack.c.l.b16 %v465
    %v783 = vunpack.c.h.b16 %v465
    %v784 = vunpack.c.l.b16 %v466
    %v785 = vunpack.c.h.b16 %v466
    %v786 = vunpack.c.l.b16 %v467
    %v787 = vunpack.c.h.b16 %v467
    %v788 = vunpack.c.l.b16 %v468
    %v789 = vunpack.c.h.b16 %v468
    %v790 = vunpack.c.l.b16 %v469
    %v791 = vunpack.c.h.b16 %v469
    %v792 = vunpack.c.l.b16 %v470
    %v793 = vunpack.c.h.b16 %v470
    %v794 = vunpack.c.l.b16 %v471
    %v795 = vunpack.c.h.b16 %v471
    %v796 = vunpack.c.l.b16 %v472
    %v797 = vunpack.c.h.b16 %v472
    %v798 = vunpack.c.l.b16 %v473
    %v799 = vunpack.c.h.b16 %v473
    %v800 = vunpack.c.l.b16 %v474
    %v801 = vunpack.c.h.b16 %v474
    %v802 = vunpack.c.l.b16 %v475
    %v803 = vunpack.c.h.b16 %v475
    %v804 = vunpack.c.l.b16 %v476
    %v805 = vunpack.c.h.b16 %v476
    %v806 = vunpack.c.l.b16 %v477
    %v807 = vunpack.c.h.b16 %v477
    %v808 = vunpack.c.l.b16 %v478
    %v809 = vunpack.c.h.b16 %v478
    %v810 = vunpack.c.l.b16 %v479
    %v811 = vunpack.c.h.b16 %v479
    %v812 = vunpack.c.l.b16 %v480
    %v813 = vunpack.c.h.b16 %v480
    %v814 = vunpack.c.l.b16 %v481
    %v815 = vunpack.c.h.b16 %v481
    %v816 = vunpack.c.l.b16 %v482
    %v817 = vunpack.c.h.b16 %v482
    %v818 = vunpack.c.l.b16 %v483
    %v819 = vunpack.c.h.b16 %v483
    %v820 = vunpack.c.l.b16 %v484
    %v821 = vunpack.c.h.b16 %v484
    %v822 = vunpack.c.l.b16 %v485
    %v823 = vunpack.c.h.b16 %v485
    %v824 = vunpack.c.l.b16 %v486
    %v825 = vunpack.c.h.b16 %v486
    %v826 = vunpack.c.l.b16 %v487
    %v827 = vunpack.c.h.b16 %v487
    %v828 = vunpack.c.l.b16 %v488
    %v829 = vunpack.c.h.b16 %v488
    %v830 = vunpack.c.l.b16 %v489
    %v831 = vunpack.c.h.b16 %v489
    %v832 = vunpack.c.l.b16 %v490
    %v833 = vunpack.c.h.b16 %v490
    %v834 = vunpack.c.l.b16 %v491
    %v835 = vunpack.c.h.b16 %v491
    %v836 = vunpack.c.l.b16 %v492
    %v837 = vunpack.c.h.b16 %v492
    %v838 = vunpack.c.l.b16 %v493
    %v839 = vunpack.c.h.b16 %v493
    %v840 = vunpack.c.l.b16 %v494
    %v841 = vunpack.c.h.b16 %v494
    %v842 = vunpack.c.l.b16 %v495
    %v843 = vunpack.c.h.b16 %v495
    %v844 = vunpack.c.l.b16 %v496
    %v845 = vunpack.c.h.b16 %v496
    %v846 = vunpack.c.l.b16 %v497
    %v847 = vunpack.c.h.b16 %v497
    %v848 = vunpack.c.l.b16 %v498
    %v849 = vunpack.c.h.b16 %v498
    %v850 = vunpack.c.l.b16 %v499
    %v851 = vunpack.c.h.b16 %v499
    %v852 = vunpack.c.l.b16 %v500
    %v853 = vunpack.c.h.b16 %v500
    %v854 = vunpack.c.l.b16 %v501
    %v855 = vunpack.c.h.b16 %v501
    %v856 = vunpack.c.l.b16 %v502
    %v857 = vunpack.c.h.b16 %v502
    %v858 = vunpack.c.l.b16 %v503
    %v859 = vunpack.c.h.b16 %v503
    %v860 = vunpack.c.l.b16 %v504
    %v861 = vunpack.c.h.b16 %v504
    %v862 = vunpack.c.l.b16 %v505
    %v863 = vunpack.c.h.b16 %v505
    %v864 = vunpack.c.l.b16 %v506
    %v865 = vunpack.c.h.b16 %v506
    %v866 = vunpack.c.l.b16 %v507
    %v867 = vunpack.c.h.b16 %v507
    %v868 = vunpack.c.l.b16 %v508
    %v869 = vunpack.c.h.b16 %v508
    %v870 = vunpack.c.l.b16 %v509
    %v871 = vunpack.c.h.b16 %v509
    %v872 = vunpack.c.l.b16 %v510
    %v873 = vunpack.c.h.b16 %v510
    %v874 = vunpack.c.l.b16 %v511
    %v875 = vunpack.c.h.b16 %v511
    %v876 = vunpack.c.l.b16 %v512
    %v877 = vunpack.c.h.b16 %v512
    %v878 = vunpack.c.l.b16 %v513
    %v879 = vunpack.c.h.b16 %v513
    %v880 = vunpack.c.l.b16 %v514
    %v881 = vunpack.c.h.b16 %v514
    %v882 = vunpack.c.l.b16 %v515
    %v883 = vunpack.c.h.b16 %v515
    %v884 = vunpack.c.l.b16 %v516
    %v885 = vunpack.c.h.b16 %v516
    %v886 = vunpack.c.l.b16 %v517
    %v887 = vunpack.c.h.b16 %v517
    %v888 = vunpack.c.l.b16 %v518
    %v889 = vunpack.c.h.b16 %v518
    %v890 = vunpack.c.l.b16 %v519
    %v891 = vunpack.c.h.b16 %v519
    %v892 = vunpack.c.l.b16 %v520
    %v893 = vunpack.c.h.b16 %v520
    %v894 = vunpack.c.l.b16 %v521
    %v895 = vunpack.c.h.b16 %v521
    %v896 = vunpack.c.l.b16 %v522
    %v897 = vunpack.c.h.b16 %v522
    %v898 = vunpack.c.l.b16 %v523
    %v899 = vunpack.c.h.b16 %v523
    %v900 = vunpack.c.l.b16 %v524
    %v901 = vunpack.c.h.b16 %v524
    %v902 = vunpack.c.l.b16 %v525
    %v903 = vunpack.c.h.b16 %v525
    %v904 = vunpack.c.l.b16 %v526
    %v905 = vunpack.c.h.b16 %v526
    %v906 = vunpack.c.l.b16 %v527
    %v907 = vunpack.c.h.b16 %v527
    %v908 = vunpack.c.l.b16 %v528
    %v909 = vunpack.c.h.b16 %v528
    %v910 = vunpack.c.l.b16 %v529
    %v911 = vunpack.c.h.b16 %v529
    %v912 = vunpack.c.l.b16 %v530
    %v913 = vunpack.c.h.b16 %v530
    %v914 = vunpack.c.l.b16 %v531
    %v915 = vunpack.c.h.b16 %v531
    %v916 = vunpack.c.l.b16 %v532
    %v917 = vunpack.c.h.b16 %v532
    %v918 = vunpack.c.l.b16 %v533
    %v919 = vunpack.c.h.b16 %v533
    %v920 = vunpack.c.l.b16 %v534
    %v921 = vunpack.c.h.b16 %v534
    %v922 = vunpack.c.l.b16 %v535
    %v923 = vunpack.c.h.b16 %v535
    %v924 = vunpack.c.l.b16 %v536
    %v925 = vunpack.c.h.b16 %v536
    %v926 = vunpack.c.l.b16 %v537
    %v927 = vunpack.c.h.b16 %v537
    %v928 = vunpack.c.l.b16 %v538
    %v929 = vunpack.c.h.b16 %v538
    %v930 = vunpack.c.l.b16 %v539
    %v931 = vunpack.c.h.b16 %v539
    %v932 = vunpack.c.l.b16 %v540
    %v933 = vunpack.c.h.b16 %v540
    %v934 = vunpack.c.l.b16 %v541
    %v935 = vunpack.c.h.b16 %v541
    %v936 = vunpack.c.l.b16 %v542
    %v937 = vunpack.c.h.b16 %v542
    %v938 = vunpack.c.l.b16 %v543
    %v939 = vunpack.c.h.b16 %v543
    %v940 = vunpack.c.l.b16 %v544
    %v941 = vunpack.c.h.b16 %v544
    %v942 = vunpack.c.l.b16 %v545
    %v943 = vunpack.c.h.b16 %v545
    %v944 = vunpack.c.l.b16 %v546
    %v945 = vunpack.c.h.b16 %v546
    %v946 = vunpack.c.l.b16 %v547
    %v947 = vunpack.c.h.b16 %v547
    %v948 = vunpack.c.l.b16 %v548
    %v949 = vunpack.c.h.b16 %v548
    %v950 = vunpack.c.l.b16 %v549
    %v951 = vunpack.c.h.b16 %v549
    %v952 = vunpack.c.l.b16 %v550
    %v953 = vunpack.c.h.b16 %v550
    %v954 = vunpack.c.l.b16 %v551
    %v955 = vunpack.c.h.b16 %v551
    %v956 = vunpack.c.l.b16 %v552
    %v957 = vunpack.c.h.b16 %v552
    %v958 = vunpack.c.l.b16 %v553
    %v959 = vunpack.c.h.b16 %v553
    %v960 = vpack.c.b16 %v708, %v704
    %v961 = vpack.c.b16 %v709, %v705
    %v962 = vpack.c.b16 %v710, %v706
    %v963 = vpack.c.b16 %v711, %v707
    %v964 = vpack.c.b16 %v716, %v712
    %v965 = vpack.c.b16 %v717, %v713
    %v966 = vpack.c.b16 %v718, %v714
    %v967 = vpack.c.b16 %v719, %v715
    %v968 = vpack.c.b16 %v724, %v720
    %v969 = vpack.c.b16 %v725, %v721
    %v970 = vpack.c.b16 %v726, %v722
    %v971 = vpack.c.b16 %v727, %v723
    %v972 = vpack.c.b16 %v732, %v728
    %v973 = vpack.c.b16 %v733, %v729
    %v974 = vpack.c.b16 %v734, %v730
    %v975 = vpack.c.b16 %v735, %v731
    %v976 = vpack.c.b16 %v740, %v736
    %v977 = vpack.c.b16 %v741, %v737
    %v978 = vpack.c.b16 %v742, %v738
    %v979 = vpack.c.b16 %v743, %v739
    %v980 = vpack.c.b16 %v748, %v744
    %v981 = vpack.c.b16 %v749, %v745
    %v982 = vpack.c.b16 %v750, %v746
    %v983 = vpack.c.b16 %v751, %v747
    %v984 = vpack.c.b16 %v756, %v752
    %v985 = vpack.c.b16 %v757, %v753
    %v986 = vpack.c.b16 %v758, %v754
    %v987 = vpack.c.b16 %v759, %v755
    %v988 = vpack.c.b16 %v764, %v760
    %v989 = vpack.c.b16 %v765, %v761
    %v990 = vpack.c.b16 %v766, %v762
    %v991 = vpack.c.b16 %v767, %v763
    %v992 = vpack.c.b16 %v772, %v768
    %v993 = vpack.c.b16 %v773, %v769
    %v994 = vpack.c.b16 %v774, %v770
    %v995 = vpack.c.b16 %v775, %v771
    %v996 = vpack.c.b16 %v780, %v776
    %v997 = vpack.c.b16 %v781, %v777
    %v998 = vpack.c.b16 %v782, %v778
    %v999 = vpack.c.b16 %v783, %v779
    %v1000 = vpack.c.b16 %v788, %v784
    %v1001 = vpack.c.b16 %v789, %v785
    %v1002 = vpack.c.b16 %v790, %v786
    %v1003 = vpack.c.b16 %v791, %v787
    %v1004 = vpack.c.b16 %v796, %v792
    %v1005 = vpack.c.b16 %v797, %v793
    %v1006 = vpack.c.b16 %v798, %v794
    %v1007 = vpack.c.b16 %v799, %v795
    %v1008 = vpack.c.b16 %v804, %v800
    %v1009 = vpack.c.b16 %v805, %v801
    %v1010 = vpack.c.b16 %v806, %v802
    %v1011 = vpack.c.b16 %v807, %v803
    %v1012 = vpack.c.b16 %v812, %v808
    %v1013 = vpack.c.b16 %v813, %v809
    %v1014 = vpack.c.b16 %v814, %v810
    %v1015 = vpack.c.b16 %v815, %v811
    %v1016 = vpack.c.b16 %v820, %v816
    %v1017 = vpack.c.b16 %v821, %v817
    %v1018 = vpack.c.b16 %v822, %v818
    %v1019 = vpack.c.b16 %v823, %v819
    %v1020 = vpack.c.b16 %v828, %v824
    %v1021 = vpack.c.b16 %v829, %v825
    %v1022 = vpack.c.b16 %v830, %v826
    %v1023 = vpack.c.b16 %v831, %v827
    %v1024 = vpack.c.b16 %v836, %v832
    %v1025 = vpack.c.b16 %v837, %v833
    %v1026 = vpack.c.b16 %v838, %v834
    %v1027 = vpack.c.b16 %v839, %v835
    %v1028 = vpack.c.b16 %v844, %v840
    %v1029 = vpack.c.b16 %v845, %v841
    %v1030 = vpack.c.b16 %v846, %v842
    %v1031 = vpack.c.b16 %v847, %v843
    %v1032 = vpack.c.b16 %v852, %v848
    %v1033 = vpack.c.b16 %v853, %v849
    %v1034 = vpack.c.b16 %v854, %v850
    %v1035 = vpack.c.b16 %v855, %v851
    %v1036 = vpack.c.b16 %v860, %v856
    %v1037 = vpack.c.b16 %v861, %v857
    %v1038 = vpack.c.b16 %v862, %v858
    %v1039 = vpack.c.b16 %v863, %v859
    %v1040 = vpack.c.b16 %v868, %v864
    %v1041 = vpack.c.b16 %v869, %v865
    %v1042 = vpack.c.b16 %v870, %v866
    %v1043 = vpack.c.b16 %v871, %v867
    %v1044 = vpack.c.b16 %v876, %v872
    %v1045 = vpack.c.b16 %v877, %v873
    %v1046 = vpack.c.b16 %v878, %v874
    %v1047 = vpack.c.b16 %v879, %v875
    %v1048 = vpack.c.b16 %v884, %v880
    %v1049 = vpack.c.b16 %v885, %v881
    %v1050 = vpack.c.b16 %v886, %v882
    %v1051 = vpack.c.b16 %v887, %v883
    %v1052 = vpack.c.b16 %v892, %v888
    %v1053 = vpack.c.b16 %v893, %v889
    %v1054 = vpack.c.b16 %v894, %v890
    %v1055 = vpack.c.b16 %v895, %v891
    %v1056 = vpack.c.b16 %v900, %v896
    %v1057 = vpack.c.b16 %v901, %v897
    %v1058 = vpack.c.b16 %v902, %v898
    %v1059 = vpack.c.b16 %v903, %v899
    %v1060 = vpack.c.b16 %v908, %v904
    %v1061 = vpack.c.b16 %v909, %v905
    %v1062 = vpack.c.b16 %v910, %v906
    %v1063 = vpack.c.b16 %v911, %v907
    %v1064 = vpack.c.b16 %v916, %v912
    %v1065 = vpack.c.b16 %v917, %v913
    %v1066 = vpack.c.b16 %v918, %v914
    %v1067 = vpack.c.b16 %v919, %v915
    %v1068 = vpack.c.b16 %v924, %v920
    %v1069 = vpack.c.b16 %v925, %v921
    %v1070 = vpack.c.b16 %v926, %v922
    %v1071 = vpack.c.b16 %v927, %v923
    %v1072 = vpack.c.b16 %v932, %v928
    %v1073 = vpack.c.b16 %v933, %v929
    %v1074 = vpack.c.b16 %v934, %v930
    %v1075 = vpack.c.b16 %v935, %v931
    %v1076 = vpack.c.b16 %v940, %v936
    %v1077 = vpack.c.b16 %v941, %v937
    %v1078 = vpack.c.b16 %v942, %v938
    %v1079 = vpack.c.b16 %v943, %v939
    %v1080 = vpack.c.b16 %v948, %v944
    %v1081 = vpack.c.b16 %v949, %v945
    %v1082 = vpack.c.b16 %v950, %v946
    %v1083 = vpack.c.b16 %v951, %v947
    %v1084 = vpack.c.b16 %v956, %v952
    %v1085 = vpack.c.b16 %v957, %v953
    %v1086 = vpack.c.b16 %v958, %v954
    %v1087 = vpack.c.b16 %v959, %v955
    %1216 = vmatprep.subr.bf16.mxu0 %v961
    %1217 = vmatpush1.bf16.msra.mxu0 %v960
    %1218 = vmatprep.subr.bf16.mxu0 %v965
    %1219 = vmatpush1.bf16.msra.mxu0 %v964
    %1220 = vmatprep.subr.bf16.mxu0 %v969
    %1221 = vmatpush1.bf16.msra.mxu0 %v968
    %1222 = vmatprep.subr.bf16.mxu0 %v973
    %1223 = vmatpush1.bf16.msra.mxu0 %v972
    %1224 = vmatprep.subr.bf16.mxu0 %v977
    %1225 = vmatpush1.bf16.msra.mxu0 %v976
    %1226 = vmatprep.subr.bf16.mxu0 %v981
    %1227 = vmatpush1.bf16.msra.mxu0 %v980
    %1228 = vmatprep.subr.bf16.mxu0 %v985
    %1229 = vmatpush1.bf16.msra.mxu0 %v984
    %1230 = vmatprep.subr.bf16.mxu0 %v989
    %1231 = vmatpush1.bf16.msra.mxu0 %v988
    %1232 = vmatprep.subr.bf16.mxu0 %v993
    %1233 = vmatpush1.bf16.msra.mxu0 %v992
    %1234 = vmatprep.subr.bf16.mxu0 %v997
    %1235 = vmatpush1.bf16.msra.mxu0 %v996
    %1236 = vmatprep.subr.bf16.mxu0 %v1001
    %1237 = vmatpush1.bf16.msra.mxu0 %v1000
    %1238 = vmatprep.subr.bf16.mxu0 %v1005
    %1239 = vmatpush1.bf16.msra.mxu0 %v1004
    %1240 = vmatprep.subr.bf16.mxu0 %v1009
    %1241 = vmatpush1.bf16.msra.mxu0 %v1008
    %1242 = vmatprep.subr.bf16.mxu0 %v1013
    %1243 = vmatpush1.bf16.msra.mxu0 %v1012
    %1244 = vmatprep.subr.bf16.mxu0 %v1017
    %1245 = vmatpush1.bf16.msra.mxu0 %v1016
    %1246 = vmatprep.subr.bf16.mxu0 %v1021
    %1247 = vmatpush1.bf16.msra.mxu0 %v1020
    %1248 = vmatprep.mubr.bf16.mxu0 %v423
    %1249 = vmatmul.mubr.bf16.gmra.mrb[0].mxu0 %v422
    %v1250 = vpop.f32.mrb[0].mxu0
    %v1251 = vadd.f32 %v559, %v1250
    %v1252 = vpop.f32.mrb[0].mxu0
    %v1253 = vadd.f32 %v563, %v1252
    %v1254 = vpop.f32.mrb[0].mxu0
    %v1255 = vpop.f32.mrb[0].mxu0
    %1256 = vdwg.mxu0
    %1257 = vmatprep.subr.bf16.mxu0 %v1025
    %1258 = vmatpush1.bf16.msra.mxu0 %v1024
    %1259 = vmatprep.subr.bf16.mxu0 %v1029
    %1260 = vmatpush1.bf16.msra.mxu0 %v1028
    %1261 = vmatprep.subr.bf16.mxu0 %v1033
    %1262 = vmatpush1.bf16.msra.mxu0 %v1032
    %1263 = vmatprep.subr.bf16.mxu0 %v1037
    %1264 = vmatpush1.bf16.msra.mxu0 %v1036
    %1265 = vmatprep.subr.bf16.mxu0 %v1041
    %1266 = vmatpush1.bf16.msra.mxu0 %v1040
    %1267 = vmatprep.subr.bf16.mxu0 %v1045
    %1268 = vmatpush1.bf16.msra.mxu0 %v1044
    %1269 = vmatprep.subr.bf16.mxu0 %v1049
    %1270 = vmatpush1.bf16.msra.mxu0 %v1048
    %1271 = vmatprep.subr.bf16.mxu0 %v1053
    %1272 = vmatpush1.bf16.msra.mxu0 %v1052
    %1273 = vmatprep.subr.bf16.mxu0 %v1057
    %1274 = vmatpush1.bf16.msra.mxu0 %v1056
    %1275 = vmatprep.subr.bf16.mxu0 %v1061
    %1276 = vmatpush1.bf16.msra.mxu0 %v1060
    %1277 = vmatprep.subr.bf16.mxu0 %v1065
    %1278 = vmatpush1.bf16.msra.mxu0 %v1064
    %1279 = vmatprep.subr.bf16.mxu0 %v1069
    %1280 = vmatpush1.bf16.msra.mxu0 %v1068
    %1281 = vmatprep.subr.bf16.mxu0 %v1073
    %1282 = vmatpush1.bf16.msra.mxu0 %v1072
    %1283 = vmatprep.subr.bf16.mxu0 %v1077
    %1284 = vmatpush1.bf16.msra.mxu0 %v1076
    %1285 = vmatprep.subr.bf16.mxu0 %v1081
    %1286 = vmatpush1.bf16.msra.mxu0 %v1080
    %1287 = vmatprep.subr.bf16.mxu0 %v1085
    %1288 = vmatpush1.bf16.msra.mxu0 %v1084
    %1289 = vmatprep.mubr.bf16.mxu0 %v425
    %1290 = vmatmul.mubr.bf16.gmra.mrb[0].mxu0 %v424
    %v1291 = vpop.f32.mrb[0].mxu0
    %v1292 = vadd.f32 %v1251, %v1291
    %v1293 = vpop.f32.mrb[0].mxu0
    %v1294 = vadd.f32 %v1253, %v1293
    %v1295 = vpop.f32.mrb[0].mxu0
    %v1296 = vpop.f32.mrb[0].mxu0
    %1297 = vdwg.mxu0
    %1298 = vmatprep.subr.bf16.mxu0 %v963
    %1299 = vmatpush1.bf16.msra.mxu0 %v962
    %1300 = vmatprep.subr.bf16.mxu0 %v967
    %1301 = vmatpush1.bf16.msra.mxu0 %v966
    %1302 = vmatprep.subr.bf16.mxu0 %v971
    %1303 = vmatpush1.bf16.msra.mxu0 %v970
    %1304 = vmatprep.subr.bf16.mxu0 %v975
    %1305 = vmatpush1.bf16.msra.mxu0 %v974
    %1306 = vmatprep.subr.bf16.mxu0 %v979
    %1307 = vmatpush1.bf16.msra.mxu0 %v978
    %1308 = vmatprep.subr.bf16.mxu0 %v983
    %1309 = vmatpush1.bf16.msra.mxu0 %v982
    %1310 = vmatprep.subr.bf16.mxu0 %v987
    %1311 = vmatpush1.bf16.msra.mxu0 %v986
    %1312 = vmatprep.subr.bf16.mxu0 %v991
    %1313 = vmatpush1.bf16.msra.mxu0 %v990
    %1314 = vmatprep.subr.bf16.mxu0 %v995
    %1315 = vmatpush1.bf16.msra.mxu0 %v994
    %1316 = vmatprep.subr.bf16.mxu0 %v999
    %1317 = vmatpush1.bf16.msra.mxu0 %v998
    %1318 = vmatprep.subr.bf16.mxu0 %v1003
    %1319 = vmatpush1.bf16.msra.mxu0 %v1002
    %1320 = vmatprep.subr.bf16.mxu0 %v1007
    %1321 = vmatpush1.bf16.msra.mxu0 %v1006
    %1322 = vmatprep.subr.bf16.mxu0 %v1011
    %1323 = vmatpush1.bf16.msra.mxu0 %v1010
    %1324 = vmatprep.subr.bf16.mxu0 %v1015
    %1325 = vmatpush1.bf16.msra.mxu0 %v1014
    %1326 = vmatprep.subr.bf16.mxu0 %v1019
    %1327 = vmatpush1.bf16.msra.mxu0 %v1018
    %1328 = vmatprep.subr.bf16.mxu0 %v1023
    %1329 = vmatpush1.bf16.msra.mxu0 %v1022
    %1330 = vmatprep.mubr.bf16.mxu0 %v423
    %1331 = vmatmul.mubr.bf16.gmra.mrb[0].mxu0 %v422
    %v1332 = vpop.f32.mrb[0].mxu0
    %v1333 = vadd.f32 %v567, %v1332
    %v1334 = vpop.f32.mrb[0].mxu0
    %v1335 = vadd.f32 %v571, %v1334
    %v1336 = vpop.f32.mrb[0].mxu0
    %v1337 = vpop.f32.mrb[0].mxu0
    %1338 = vdwg.mxu0
    %1339 = vmatprep.subr.bf16.mxu0 %v1027
    %1340 = vmatpush1.bf16.msra.mxu0 %v1026
    %1341 = vmatprep.subr.bf16.mxu0 %v1031
    %1342 = vmatpush1.bf16.msra.mxu0 %v1030
    %1343 = vmatprep.subr.bf16.mxu0 %v1035
    %1344 = vmatpush1.bf16.msra.mxu0 %v1034
    %1345 = vmatprep.subr.bf16.mxu0 %v1039
    %1346 = vmatpush1.bf16.msra.mxu0 %v1038
    %1347 = vmatprep.subr.bf16.mxu0 %v1043
    %1348 = vmatpush1.bf16.msra.mxu0 %v1042
    %1349 = vmatprep.subr.bf16.mxu0 %v1047
    %1350 = vmatpush1.bf16.msra.mxu0 %v1046
    %1351 = vmatprep.subr.bf16.mxu0 %v1051
    %1352 = vmatpush1.bf16.msra.mxu0 %v1050
    %1353 = vmatprep.subr.bf16.mxu0 %v1055
    %1354 = vmatpush1.bf16.msra.mxu0 %v1054
    %1355 = vmatprep.subr.bf16.mxu0 %v1059
    %1356 = vmatpush1.bf16.msra.mxu0 %v1058
    %1357 = vmatprep.subr.bf16.mxu0 %v1063
    %1358 = vmatpush1.bf16.msra.mxu0 %v1062
    %1359 = vmatprep.subr.bf16.mxu0 %v1067
    %1360 = vmatpush1.bf16.msra.mxu0 %v1066
    %1361 = vmatprep.subr.bf16.mxu0 %v1071
    %1362 = vmatpush1.bf16.msra.mxu0 %v1070
    %1363 = vmatprep.subr.bf16.mxu0 %v1075
    %1364 = vmatpush1.bf16.msra.mxu0 %v1074
    %1365 = vmatprep.subr.bf16.mxu0 %v1079
    %1366 = vmatpush1.bf16.msra.mxu0 %v1078
    %1367 = vmatprep.subr.bf16.mxu0 %v1083
    %1368 = vmatpush1.bf16.msra.mxu0 %v1082
    %1369 = vmatprep.subr.bf16.mxu0 %v1087
    %1370 = vmatpush1.bf16.msra.mxu0 %v1086
    %1371 = vmatprep.mubr.bf16.mxu0 %v425
    %1372 = vmatmul.mubr.bf16.gmra.mrb[0].mxu0 %v424
    %v1373 = vpop.f32.mrb[0].mxu0
    %v1374 = vadd.f32 %v1333, %v1373
    %v1375 = vpop.f32.mrb[0].mxu0
    %v1376 = vadd.f32 %v1335, %v1375
    %v1377 = vpop.f32.mrb[0].mxu0
    %v1378 = vpop.f32.mrb[0].mxu0
    %1379 = vdwg.mxu0
    %v1380 = vmax.f32 %v1292, 0.0
    %v1381 = vmax.f32 %v1294, 0.0
    %v1382 = vmax.f32 %v1374, 0.0
    %v1383 = vmax.f32 %v1376, 0.0
    %v1384 = vpack.c.bf16 %v1380, %v1380
    %v1385 = vpack.c.bf16 %v1381, %v1381
    %v1386 = vpack.c.bf16 %v1382, %v1382
    %v1387 = vpack.c.bf16 %v1383, %v1383
    %v1388 = vld [vmem:[#allocation8] sm:$0xff]
    %v1389 = vld [vmem:[#allocation8 + $0x8] sm:$0xff]
    %v1390 = vld [vmem:[#allocation8 + $0x10] sm:$0xff]
    %v1391 = vld [vmem:[#allocation8 + $0x18] sm:$0xff]
    %v1392 = vld [vmem:[#allocation8 + $0x20] sm:$0xff]
    %v1393 = vld [vmem:[#allocation8 + $0x28] sm:$0xff]
    %v1394 = vld [vmem:[#allocation8 + $0x30] sm:$0xff]
    %v1395 = vld [vmem:[#allocation8 + $0x38] sm:$0xff]
    %v1396 = vld [vmem:[#allocation8 + $0x40] sm:$0xff]
    %v1397 = vld [vmem:[#allocation8 + $0x48] sm:$0xff]
    %v1398 = vld [vmem:[#allocation8 + $0x50] sm:$0xff]
    %v1399 = vld [vmem:[#allocation8 + $0x58] sm:$0xff]
    %v1400 = vld [vmem:[#allocation8 + $0x60] sm:$0xff]
    %v1401 = vld [vmem:[#allocation8 + $0x68] sm:$0xff]
    %v1402 = vld [vmem:[#allocation8 + $0x70] sm:$0xff]
    %v1403 = vld [vmem:[#allocation8 + $0x78] sm:$0xff]
    %v1404 = vld [vmem:[#allocation8 + $0x80] sm:$0xff]
    %v1405 = vld [vmem:[#allocation8 + $0x88] sm:$0xff]
    %v1406 = vld [vmem:[#allocation8 + $0x90] sm:$0xff]
    %v1407 = vld [vmem:[#allocation8 + $0x98] sm:$0xff]
    %v1408 = vld [vmem:[#allocation8 + $0xa0] sm:$0xff]
    %v1409 = vld [vmem:[#allocation8 + $0xa8] sm:$0xff]
    %v1410 = vld [vmem:[#allocation8 + $0xb0] sm:$0xff]
    %v1411 = vld [vmem:[#allocation8 + $0xb8] sm:$0xff]
    %v1412 = vld [vmem:[#allocation8 + $0xc0] sm:$0xff]
    %v1413 = vld [vmem:[#allocation8 + $0xc8] sm:$0xff]
    %v1414 = vld [vmem:[#allocation8 + $0xd0] sm:$0xff]
    %v1415 = vld [vmem:[#allocation8 + $0xd8] sm:$0xff]
    %v1416 = vld [vmem:[#allocation8 + $0xe0] sm:$0xff]
    %v1417 = vld [vmem:[#allocation8 + $0xe8] sm:$0xff]
    %v1418 = vld [vmem:[#allocation8 + $0xf0] sm:$0xff]
    %v1419 = vld [vmem:[#allocation8 + $0xf8] sm:$0xff]
    %v1420 = vld [vmem:[#allocation8 + $0x100] sm:$0xff]
    %v1421 = vld [vmem:[#allocation8 + $0x108] sm:$0xff]
    %v1422 = vld [vmem:[#allocation8 + $0x110] sm:$0xff]
    %v1423 = vld [vmem:[#allocation8 + $0x118] sm:$0xff]
    %v1424 = vld [vmem:[#allocation8 + $0x120] sm:$0xff]
    %v1425 = vld [vmem:[#allocation8 + $0x128] sm:$0xff]
    %v1426 = vld [vmem:[#allocation8 + $0x130] sm:$0xff]
    %v1427 = vld [vmem:[#allocation8 + $0x138] sm:$0xff]
    %v1428 = vld [vmem:[#allocation8 + $0x140] sm:$0xff]
    %v1429 = vld [vmem:[#allocation8 + $0x148] sm:$0xff]
    %v1430 = vld [vmem:[#allocation8 + $0x150] sm:$0xff]
    %v1431 = vld [vmem:[#allocation8 + $0x158] sm:$0xff]
    %v1432 = vld [vmem:[#allocation8 + $0x160] sm:$0xff]
    %v1433 = vld [vmem:[#allocation8 + $0x168] sm:$0xff]
    %v1434 = vld [vmem:[#allocation8 + $0x170] sm:$0xff]
    %v1435 = vld [vmem:[#allocation8 + $0x178] sm:$0xff]
    %v1436 = vld [vmem:[#allocation8 + $0x180] sm:$0xff]
    %v1437 = vld [vmem:[#allocation8 + $0x188] sm:$0xff]
    %v1438 = vld [vmem:[#allocation8 + $0x190] sm:$0xff]
    %v1439 = vld [vmem:[#allocation8 + $0x198] sm:$0xff]
    %v1440 = vld [vmem:[#allocation8 + $0x1a0] sm:$0xff]
    %v1441 = vld [vmem:[#allocation8 + $0x1a8] sm:$0xff]
    %v1442 = vld [vmem:[#allocation8 + $0x1b0] sm:$0xff]
    %v1443 = vld [vmem:[#allocation8 + $0x1b8] sm:$0xff]
    %v1444 = vld [vmem:[#allocation8 + $0x1c0] sm:$0xff]
    %v1445 = vld [vmem:[#allocation8 + $0x1c8] sm:$0xff]
    %v1446 = vld [vmem:[#allocation8 + $0x1d0] sm:$0xff]
    %v1447 = vld [vmem:[#allocation8 + $0x1d8] sm:$0xff]
    %v1448 = vld [vmem:[#allocation8 + $0x1e0] sm:$0xff]
    %v1449 = vld [vmem:[#allocation8 + $0x1e8] sm:$0xff]
    %v1450 = vld [vmem:[#allocation8 + $0x1f0] sm:$0xff]
    %v1451 = vld [vmem:[#allocation8 + $0x1f8] sm:$0xff]
    %v1452 = vld [vmem:[#allocation8 + $0x200] sm:$0xff]
    %v1453 = vld [vmem:[#allocation8 + $0x208] sm:$0xff]
    %v1454 = vld [vmem:[#allocation8 + $0x210] sm:$0xff]
    %v1455 = vld [vmem:[#allocation8 + $0x218] sm:$0xff]
    %v1456 = vld [vmem:[#allocation8 + $0x220] sm:$0xff]
    %v1457 = vld [vmem:[#allocation8 + $0x228] sm:$0xff]
    %v1458 = vld [vmem:[#allocation8 + $0x230] sm:$0xff]
    %v1459 = vld [vmem:[#allocation8 + $0x238] sm:$0xff]
    %v1460 = vld [vmem:[#allocation8 + $0x240] sm:$0xff]
    %v1461 = vld [vmem:[#allocation8 + $0x248] sm:$0xff]
    %v1462 = vld [vmem:[#allocation8 + $0x250] sm:$0xff]
    %v1463 = vld [vmem:[#allocation8 + $0x258] sm:$0xff]
    %v1464 = vld [vmem:[#allocation8 + $0x260] sm:$0xff]
    %v1465 = vld [vmem:[#allocation8 + $0x268] sm:$0xff]
    %v1466 = vld [vmem:[#allocation8 + $0x270] sm:$0xff]
    %v1467 = vld [vmem:[#allocation8 + $0x278] sm:$0xff]
    %v1468 = vld [vmem:[#allocation8 + $0x280] sm:$0xff]
    %v1469 = vld [vmem:[#allocation8 + $0x288] sm:$0xff]
    %v1470 = vld [vmem:[#allocation8 + $0x290] sm:$0xff]
    %v1471 = vld [vmem:[#allocation8 + $0x298] sm:$0xff]
    %v1472 = vld [vmem:[#allocation8 + $0x2a0] sm:$0xff]
    %v1473 = vld [vmem:[#allocation8 + $0x2a8] sm:$0xff]
    %v1474 = vld [vmem:[#allocation8 + $0x2b0] sm:$0xff]
    %v1475 = vld [vmem:[#allocation8 + $0x2b8] sm:$0xff]
    %v1476 = vld [vmem:[#allocation8 + $0x2c0] sm:$0xff]
    %v1477 = vld [vmem:[#allocation8 + $0x2c8] sm:$0xff]
    %v1478 = vld [vmem:[#allocation8 + $0x2d0] sm:$0xff]
    %v1479 = vld [vmem:[#allocation8 + $0x2d8] sm:$0xff]
    %v1480 = vld [vmem:[#allocation8 + $0x2e0] sm:$0xff]
    %v1481 = vld [vmem:[#allocation8 + $0x2e8] sm:$0xff]
    %v1482 = vld [vmem:[#allocation8 + $0x2f0] sm:$0xff]
    %v1483 = vld [vmem:[#allocation8 + $0x2f8] sm:$0xff]
    %v1484 = vld [vmem:[#allocation8 + $0x300] sm:$0xff]
    %v1485 = vld [vmem:[#allocation8 + $0x308] sm:$0xff]
    %v1486 = vld [vmem:[#allocation8 + $0x310] sm:$0xff]
    %v1487 = vld [vmem:[#allocation8 + $0x318] sm:$0xff]
    %v1488 = vld [vmem:[#allocation8 + $0x320] sm:$0xff]
    %v1489 = vld [vmem:[#allocation8 + $0x328] sm:$0xff]
    %v1490 = vld [vmem:[#allocation8 + $0x330] sm:$0xff]
    %v1491 = vld [vmem:[#allocation8 + $0x338] sm:$0xff]
    %v1492 = vld [vmem:[#allocation8 + $0x340] sm:$0xff]
    %v1493 = vld [vmem:[#allocation8 + $0x348] sm:$0xff]
    %v1494 = vld [vmem:[#allocation8 + $0x350] sm:$0xff]
    %v1495 = vld [vmem:[#allocation8 + $0x358] sm:$0xff]
    %v1496 = vld [vmem:[#allocation8 + $0x360] sm:$0xff]
    %v1497 = vld [vmem:[#allocation8 + $0x368] sm:$0xff]
    %v1498 = vld [vmem:[#allocation8 + $0x370] sm:$0xff]
    %v1499 = vld [vmem:[#allocation8 + $0x378] sm:$0xff]
    %v1500 = vld [vmem:[#allocation8 + $0x380] sm:$0xff]
    %v1501 = vld [vmem:[#allocation8 + $0x388] sm:$0xff]
    %v1502 = vld [vmem:[#allocation8 + $0x390] sm:$0xff]
    %v1503 = vld [vmem:[#allocation8 + $0x398] sm:$0xff]
    %v1504 = vld [vmem:[#allocation8 + $0x3a0] sm:$0xff]
    %v1505 = vld [vmem:[#allocation8 + $0x3a8] sm:$0xff]
    %v1506 = vld [vmem:[#allocation8 + $0x3b0] sm:$0xff]
    %v1507 = vld [vmem:[#allocation8 + $0x3b8] sm:$0xff]
    %v1508 = vld [vmem:[#allocation8 + $0x3c0] sm:$0xff]
    %v1509 = vld [vmem:[#allocation8 + $0x3c8] sm:$0xff]
    %v1510 = vld [vmem:[#allocation8 + $0x3d0] sm:$0xff]
    %v1511 = vld [vmem:[#allocation8 + $0x3d8] sm:$0xff]
    %v1512 = vld [vmem:[#allocation8 + $0x3e0] sm:$0xff]
    %v1513 = vld [vmem:[#allocation8 + $0x3e8] sm:$0xff]
    %v1514 = vld [vmem:[#allocation8 + $0x3f0] sm:$0xff]
    %v1515 = vld [vmem:[#allocation8 + $0x3f8] sm:$0xff]
    %v1516 = vld [vmem:[%s6] sm:$0xf]
    %v1518 = vlaneseq
    %v1519 = vshrl.u32 %v1518, 7
    %v1520 = vsub.s32 0, %v1519
    %v1521 = vrot.slane %v1516, %v1520
    %v1522 = vlaneseq
    %v1523 = vshrl.u32 %v1522, 7
    %v1524 = vsub.s32 1, %v1523
    %v1525 = vrot.slane %v1516, %v1524
    %v1526 = vlaneseq
    %v1527 = vshrl.u32 %v1526, 7
    %v1528 = vsub.s32 2, %v1527
    %v1529 = vrot.slane %v1516, %v1528
    %v1530 = vlaneseq
    %v1531 = vshrl.u32 %v1530, 7
    %v1532 = vsub.s32 3, %v1531
    %v1533 = vrot.slane %v1516, %v1532
    %v1666 = vunpack.c.l.b16 %v1388
    %v1667 = vunpack.c.h.b16 %v1388
    %v1668 = vunpack.c.l.b16 %v1389
    %v1669 = vunpack.c.h.b16 %v1389
    %v1670 = vunpack.c.l.b16 %v1390
    %v1671 = vunpack.c.h.b16 %v1390
    %v1672 = vunpack.c.l.b16 %v1391
    %v1673 = vunpack.c.h.b16 %v1391
    %v1674 = vunpack.c.l.b16 %v1392
    %v1675 = vunpack.c.h.b16 %v1392
    %v1676 = vunpack.c.l.b16 %v1393
    %v1677 = vunpack.c.h.b16 %v1393
    %v1678 = vunpack.c.l.b16 %v1394
    %v1679 = vunpack.c.h.b16 %v1394
    %v1680 = vunpack.c.l.b16 %v1395
    %v1681 = vunpack.c.h.b16 %v1395
    %v1682 = vunpack.c.l.b16 %v1396
    %v1683 = vunpack.c.h.b16 %v1396
    %v1684 = vunpack.c.l.b16 %v1397
    %v1685 = vunpack.c.h.b16 %v1397
    %v1686 = vunpack.c.l.b16 %v1398
    %v1687 = vunpack.c.h.b16 %v1398
    %v1688 = vunpack.c.l.b16 %v1399
    %v1689 = vunpack.c.h.b16 %v1399
    %v1690 = vunpack.c.l.b16 %v1400
    %v1691 = vunpack.c.h.b16 %v1400
    %v1692 = vunpack.c.l.b16 %v1401
    %v1693 = vunpack.c.h.b16 %v1401
    %v1694 = vunpack.c.l.b16 %v1402
    %v1695 = vunpack.c.h.b16 %v1402
    %v1696 = vunpack.c.l.b16 %v1403
    %v1697 = vunpack.c.h.b16 %v1403
    %v1698 = vunpack.c.l.b16 %v1404
    %v1699 = vunpack.c.h.b16 %v1404
    %v1700 = vunpack.c.l.b16 %v1405
    %v1701 = vunpack.c.h.b16 %v1405
    %v1702 = vunpack.c.l.b16 %v1406
    %v1703 = vunpack.c.h.b16 %v1406
    %v1704 = vunpack.c.l.b16 %v1407
    %v1705 = vunpack.c.h.b16 %v1407
    %v1706 = vunpack.c.l.b16 %v1408
    %v1707 = vunpack.c.h.b16 %v1408
    %v1708 = vunpack.c.l.b16 %v1409
    %v1709 = vunpack.c.h.b16 %v1409
    %v1710 = vunpack.c.l.b16 %v1410
    %v1711 = vunpack.c.h.b16 %v1410
    %v1712 = vunpack.c.l.b16 %v1411
    %v1713 = vunpack.c.h.b16 %v1411
    %v1714 = vunpack.c.l.b16 %v1412
    %v1715 = vunpack.c.h.b16 %v1412
    %v1716 = vunpack.c.l.b16 %v1413
    %v1717 = vunpack.c.h.b16 %v1413
    %v1718 = vunpack.c.l.b16 %v1414
    %v1719 = vunpack.c.h.b16 %v1414
    %v1720 = vunpack.c.l.b16 %v1415
    %v1721 = vunpack.c.h.b16 %v1415
    %v1722 = vunpack.c.l.b16 %v1416
    %v1723 = vunpack.c.h.b16 %v1416
    %v1724 = vunpack.c.l.b16 %v1417
    %v1725 = vunpack.c.h.b16 %v1417
    %v1726 = vunpack.c.l.b16 %v1418
    %v1727 = vunpack.c.h.b16 %v1418
    %v1728 = vunpack.c.l.b16 %v1419
    %v1729 = vunpack.c.h.b16 %v1419
    %v1730 = vunpack.c.l.b16 %v1420
    %v1731 = vunpack.c.h.b16 %v1420
    %v1732 = vunpack.c.l.b16 %v1421
    %v1733 = vunpack.c.h.b16 %v1421
    %v1734 = vunpack.c.l.b16 %v1422
    %v1735 = vunpack.c.h.b16 %v1422
    %v1736 = vunpack.c.l.b16 %v1423
    %v1737 = vunpack.c.h.b16 %v1423
    %v1738 = vunpack.c.l.b16 %v1424
    %v1739 = vunpack.c.h.b16 %v1424
    %v1740 = vunpack.c.l.b16 %v1425
    %v1741 = vunpack.c.h.b16 %v1425
    %v1742 = vunpack.c.l.b16 %v1426
    %v1743 = vunpack.c.h.b16 %v1426
    %v1744 = vunpack.c.l.b16 %v1427
    %v1745 = vunpack.c.h.b16 %v1427
    %v1746 = vunpack.c.l.b16 %v1428
    %v1747 = vunpack.c.h.b16 %v1428
    %v1748 = vunpack.c.l.b16 %v1429
    %v1749 = vunpack.c.h.b16 %v1429
    %v1750 = vunpack.c.l.b16 %v1430
    %v1751 = vunpack.c.h.b16 %v1430
    %v1752 = vunpack.c.l.b16 %v1431
    %v1753 = vunpack.c.h.b16 %v1431
    %v1754 = vunpack.c.l.b16 %v1432
    %v1755 = vunpack.c.h.b16 %v1432
    %v1756 = vunpack.c.l.b16 %v1433
    %v1757 = vunpack.c.h.b16 %v1433
    %v1758 = vunpack.c.l.b16 %v1434
    %v1759 = vunpack.c.h.b16 %v1434
    %v1760 = vunpack.c.l.b16 %v1435
    %v1761 = vunpack.c.h.b16 %v1435
    %v1762 = vunpack.c.l.b16 %v1436
    %v1763 = vunpack.c.h.b16 %v1436
    %v1764 = vunpack.c.l.b16 %v1437
    %v1765 = vunpack.c.h.b16 %v1437
    %v1766 = vunpack.c.l.b16 %v1438
    %v1767 = vunpack.c.h.b16 %v1438
    %v1768 = vunpack.c.l.b16 %v1439
    %v1769 = vunpack.c.h.b16 %v1439
    %v1770 = vunpack.c.l.b16 %v1440
    %v1771 = vunpack.c.h.b16 %v1440
    %v1772 = vunpack.c.l.b16 %v1441
    %v1773 = vunpack.c.h.b16 %v1441
    %v1774 = vunpack.c.l.b16 %v1442
    %v1775 = vunpack.c.h.b16 %v1442
    %v1776 = vunpack.c.l.b16 %v1443
    %v1777 = vunpack.c.h.b16 %v1443
    %v1778 = vunpack.c.l.b16 %v1444
    %v1779 = vunpack.c.h.b16 %v1444
    %v1780 = vunpack.c.l.b16 %v1445
    %v1781 = vunpack.c.h.b16 %v1445
    %v1782 = vunpack.c.l.b16 %v1446
    %v1783 = vunpack.c.h.b16 %v1446
    %v1784 = vunpack.c.l.b16 %v1447
    %v1785 = vunpack.c.h.b16 %v1447
    %v1786 = vunpack.c.l.b16 %v1448
    %v1787 = vunpack.c.h.b16 %v1448
    %v1788 = vunpack.c.l.b16 %v1449
    %v1789 = vunpack.c.h.b16 %v1449
    %v1790 = vunpack.c.l.b16 %v1450
    %v1791 = vunpack.c.h.b16 %v1450
    %v1792 = vunpack.c.l.b16 %v1451
    %v1793 = vunpack.c.h.b16 %v1451
    %v1794 = vunpack.c.l.b16 %v1452
    %v1795 = vunpack.c.h.b16 %v1452
    %v1796 = vunpack.c.l.b16 %v1453
    %v1797 = vunpack.c.h.b16 %v1453
    %v1798 = vunpack.c.l.b16 %v1454
    %v1799 = vunpack.c.h.b16 %v1454
    %v1800 = vunpack.c.l.b16 %v1455
    %v1801 = vunpack.c.h.b16 %v1455
    %v1802 = vunpack.c.l.b16 %v1456
    %v1803 = vunpack.c.h.b16 %v1456
    %v1804 = vunpack.c.l.b16 %v1457
    %v1805 = vunpack.c.h.b16 %v1457
    %v1806 = vunpack.c.l.b16 %v1458
    %v1807 = vunpack.c.h.b16 %v1458
    %v1808 = vunpack.c.l.b16 %v1459
    %v1809 = vunpack.c.h.b16 %v1459
    %v1810 = vunpack.c.l.b16 %v1460
    %v1811 = vunpack.c.h.b16 %v1460
    %v1812 = vunpack.c.l.b16 %v1461
    %v1813 = vunpack.c.h.b16 %v1461
    %v1814 = vunpack.c.l.b16 %v1462
    %v1815 = vunpack.c.h.b16 %v1462
    %v1816 = vunpack.c.l.b16 %v1463
    %v1817 = vunpack.c.h.b16 %v1463
    %v1818 = vunpack.c.l.b16 %v1464
    %v1819 = vunpack.c.h.b16 %v1464
    %v1820 = vunpack.c.l.b16 %v1465
    %v1821 = vunpack.c.h.b16 %v1465
    %v1822 = vunpack.c.l.b16 %v1466
    %v1823 = vunpack.c.h.b16 %v1466
    %v1824 = vunpack.c.l.b16 %v1467
    %v1825 = vunpack.c.h.b16 %v1467
    %v1826 = vunpack.c.l.b16 %v1468
    %v1827 = vunpack.c.h.b16 %v1468
    %v1828 = vunpack.c.l.b16 %v1469
    %v1829 = vunpack.c.h.b16 %v1469
    %v1830 = vunpack.c.l.b16 %v1470
    %v1831 = vunpack.c.h.b16 %v1470
    %v1832 = vunpack.c.l.b16 %v1471
    %v1833 = vunpack.c.h.b16 %v1471
    %v1834 = vunpack.c.l.b16 %v1472
    %v1835 = vunpack.c.h.b16 %v1472
    %v1836 = vunpack.c.l.b16 %v1473
    %v1837 = vunpack.c.h.b16 %v1473
    %v1838 = vunpack.c.l.b16 %v1474
    %v1839 = vunpack.c.h.b16 %v1474
    %v1840 = vunpack.c.l.b16 %v1475
    %v1841 = vunpack.c.h.b16 %v1475
    %v1842 = vunpack.c.l.b16 %v1476
    %v1843 = vunpack.c.h.b16 %v1476
    %v1844 = vunpack.c.l.b16 %v1477
    %v1845 = vunpack.c.h.b16 %v1477
    %v1846 = vunpack.c.l.b16 %v1478
    %v1847 = vunpack.c.h.b16 %v1478
    %v1848 = vunpack.c.l.b16 %v1479
    %v1849 = vunpack.c.h.b16 %v1479
    %v1850 = vunpack.c.l.b16 %v1480
    %v1851 = vunpack.c.h.b16 %v1480
    %v1852 = vunpack.c.l.b16 %v1481
    %v1853 = vunpack.c.h.b16 %v1481
    %v1854 = vunpack.c.l.b16 %v1482
    %v1855 = vunpack.c.h.b16 %v1482
    %v1856 = vunpack.c.l.b16 %v1483
    %v1857 = vunpack.c.h.b16 %v1483
    %v1858 = vunpack.c.l.b16 %v1484
    %v1859 = vunpack.c.h.b16 %v1484
    %v1860 = vunpack.c.l.b16 %v1485
    %v1861 = vunpack.c.h.b16 %v1485
    %v1862 = vunpack.c.l.b16 %v1486
    %v1863 = vunpack.c.h.b16 %v1486
    %v1864 = vunpack.c.l.b16 %v1487
    %v1865 = vunpack.c.h.b16 %v1487
    %v1866 = vunpack.c.l.b16 %v1488
    %v1867 = vunpack.c.h.b16 %v1488
    %v1868 = vunpack.c.l.b16 %v1489
    %v1869 = vunpack.c.h.b16 %v1489
    %v1870 = vunpack.c.l.b16 %v1490
    %v1871 = vunpack.c.h.b16 %v1490
    %v1872 = vunpack.c.l.b16 %v1491
    %v1873 = vunpack.c.h.b16 %v1491
    %v1874 = vunpack.c.l.b16 %v1492
    %v1875 = vunpack.c.h.b16 %v1492
    %v1876 = vunpack.c.l.b16 %v1493
    %v1877 = vunpack.c.h.b16 %v1493
    %v1878 = vunpack.c.l.b16 %v1494
    %v1879 = vunpack.c.h.b16 %v1494
    %v1880 = vunpack.c.l.b16 %v1495
    %v1881 = vunpack.c.h.b16 %v1495
    %v1882 = vunpack.c.l.b16 %v1496
    %v1883 = vunpack.c.h.b16 %v1496
    %v1884 = vunpack.c.l.b16 %v1497
    %v1885 = vunpack.c.h.b16 %v1497
    %v1886 = vunpack.c.l.b16 %v1498
    %v1887 = vunpack.c.h.b16 %v1498
    %v1888 = vunpack.c.l.b16 %v1499
    %v1889 = vunpack.c.h.b16 %v1499
    %v1890 = vunpack.c.l.b16 %v1500
    %v1891 = vunpack.c.h.b16 %v1500
    %v1892 = vunpack.c.l.b16 %v1501
    %v1893 = vunpack.c.h.b16 %v1501
    %v1894 = vunpack.c.l.b16 %v1502
    %v1895 = vunpack.c.h.b16 %v1502
    %v1896 = vunpack.c.l.b16 %v1503
    %v1897 = vunpack.c.h.b16 %v1503
    %v1898 = vunpack.c.l.b16 %v1504
    %v1899 = vunpack.c.h.b16 %v1504
    %v1900 = vunpack.c.l.b16 %v1505
    %v1901 = vunpack.c.h.b16 %v1505
    %v1902 = vunpack.c.l.b16 %v1506
    %v1903 = vunpack.c.h.b16 %v1506
    %v1904 = vunpack.c.l.b16 %v1507
    %v1905 = vunpack.c.h.b16 %v1507
    %v1906 = vunpack.c.l.b16 %v1508
    %v1907 = vunpack.c.h.b16 %v1508
    %v1908 = vunpack.c.l.b16 %v1509
    %v1909 = vunpack.c.h.b16 %v1509
    %v1910 = vunpack.c.l.b16 %v1510
    %v1911 = vunpack.c.h.b16 %v1510
    %v1912 = vunpack.c.l.b16 %v1511
    %v1913 = vunpack.c.h.b16 %v1511
    %v1914 = vunpack.c.l.b16 %v1512
    %v1915 = vunpack.c.h.b16 %v1512
    %v1916 = vunpack.c.l.b16 %v1513
    %v1917 = vunpack.c.h.b16 %v1513
    %v1918 = vunpack.c.l.b16 %v1514
    %v1919 = vunpack.c.h.b16 %v1514
    %v1920 = vunpack.c.l.b16 %v1515
    %v1921 = vunpack.c.h.b16 %v1515
    %v1922 = vpack.c.b16 %v1670, %v1666
    %v1923 = vpack.c.b16 %v1671, %v1667
    %v1924 = vpack.c.b16 %v1672, %v1668
    %v1925 = vpack.c.b16 %v1673, %v1669
    %v1926 = vpack.c.b16 %v1678, %v1674
    %v1927 = vpack.c.b16 %v1679, %v1675
    %v1928 = vpack.c.b16 %v1680, %v1676
    %v1929 = vpack.c.b16 %v1681, %v1677
    %v1930 = vpack.c.b16 %v1686, %v1682
    %v1931 = vpack.c.b16 %v1687, %v1683
    %v1932 = vpack.c.b16 %v1688, %v1684
    %v1933 = vpack.c.b16 %v1689, %v1685
    %v1934 = vpack.c.b16 %v1694, %v1690
    %v1935 = vpack.c.b16 %v1695, %v1691
    %v1936 = vpack.c.b16 %v1696, %v1692
    %v1937 = vpack.c.b16 %v1697, %v1693
    %v1938 = vpack.c.b16 %v1702, %v1698
    %v1939 = vpack.c.b16 %v1703, %v1699
    %v1940 = vpack.c.b16 %v1704, %v1700
    %v1941 = vpack.c.b16 %v1705, %v1701
    %v1942 = vpack.c.b16 %v1710, %v1706
    %v1943 = vpack.c.b16 %v1711, %v1707
    %v1944 = vpack.c.b16 %v1712, %v1708
    %v1945 = vpack.c.b16 %v1713, %v1709
    %v1946 = vpack.c.b16 %v1718, %v1714
    %v1947 = vpack.c.b16 %v1719, %v1715
    %v1948 = vpack.c.b16 %v1720, %v1716
    %v1949 = vpack.c.b16 %v1721, %v1717
    %v1950 = vpack.c.b16 %v1726, %v1722
    %v1951 = vpack.c.b16 %v1727, %v1723
    %v1952 = vpack.c.b16 %v1728, %v1724
    %v1953 = vpack.c.b16 %v1729, %v1725
    %v1954 = vpack.c.b16 %v1734, %v1730
    %v1955 = vpack.c.b16 %v1735, %v1731
    %v1956 = vpack.c.b16 %v1736, %v1732
    %v1957 = vpack.c.b16 %v1737, %v1733
    %v1958 = vpack.c.b16 %v1742, %v1738
    %v1959 = vpack.c.b16 %v1743, %v1739
    %v1960 = vpack.c.b16 %v1744, %v1740
    %v1961 = vpack.c.b16 %v1745, %v1741
    %v1962 = vpack.c.b16 %v1750, %v1746
    %v1963 = vpack.c.b16 %v1751, %v1747
    %v1964 = vpack.c.b16 %v1752, %v1748
    %v1965 = vpack.c.b16 %v1753, %v1749
    %v1966 = vpack.c.b16 %v1758, %v1754
    %v1967 = vpack.c.b16 %v1759, %v1755
    %v1968 = vpack.c.b16 %v1760, %v1756
    %v1969 = vpack.c.b16 %v1761, %v1757
    %v1970 = vpack.c.b16 %v1766, %v1762
    %v1971 = vpack.c.b16 %v1767, %v1763
    %v1972 = vpack.c.b16 %v1768, %v1764
    %v1973 = vpack.c.b16 %v1769, %v1765
    %v1974 = vpack.c.b16 %v1774, %v1770
    %v1975 = vpack.c.b16 %v1775, %v1771
    %v1976 = vpack.c.b16 %v1776, %v1772
    %v1977 = vpack.c.b16 %v1777, %v1773
    %v1978 = vpack.c.b16 %v1782, %v1778
    %v1979 = vpack.c.b16 %v1783, %v1779
    %v1980 = vpack.c.b16 %v1784, %v1780
    %v1981 = vpack.c.b16 %v1785, %v1781
    %v1982 = vpack.c.b16 %v1790, %v1786
    %v1983 = vpack.c.b16 %v1791, %v1787
    %v1984 = vpack.c.b16 %v1792, %v1788
    %v1985 = vpack.c.b16 %v1793, %v1789
    %v1986 = vpack.c.b16 %v1798, %v1794
    %v1987 = vpack.c.b16 %v1799, %v1795
    %v1988 = vpack.c.b16 %v1800, %v1796
    %v1989 = vpack.c.b16 %v1801, %v1797
    %v1990 = vpack.c.b16 %v1806, %v1802
    %v1991 = vpack.c.b16 %v1807, %v1803
    %v1992 = vpack.c.b16 %v1808, %v1804
    %v1993 = vpack.c.b16 %v1809, %v1805
    %v1994 = vpack.c.b16 %v1814, %v1810
    %v1995 = vpack.c.b16 %v1815, %v1811
    %v1996 = vpack.c.b16 %v1816, %v1812
    %v1997 = vpack.c.b16 %v1817, %v1813
    %v1998 = vpack.c.b16 %v1822, %v1818
    %v1999 = vpack.c.b16 %v1823, %v1819
    %v2000 = vpack.c.b16 %v1824, %v1820
    %v2001 = vpack.c.b16 %v1825, %v1821
    %v2002 = vpack.c.b16 %v1830, %v1826
    %v2003 = vpack.c.b16 %v1831, %v1827
    %v2004 = vpack.c.b16 %v1832, %v1828
    %v2005 = vpack.c.b16 %v1833, %v1829
    %v2006 = vpack.c.b16 %v1838, %v1834
    %v2007 = vpack.c.b16 %v1839, %v1835
    %v2008 = vpack.c.b16 %v1840, %v1836
    %v2009 = vpack.c.b16 %v1841, %v1837
    %v2010 = vpack.c.b16 %v1846, %v1842
    %v2011 = vpack.c.b16 %v1847, %v1843
    %v2012 = vpack.c.b16 %v1848, %v1844
    %v2013 = vpack.c.b16 %v1849, %v1845
    %v2014 = vpack.c.b16 %v1854, %v1850
    %v2015 = vpack.c.b16 %v1855, %v1851
    %v2016 = vpack.c.b16 %v1856, %v1852
    %v2017 = vpack.c.b16 %v1857, %v1853
    %v2018 = vpack.c.b16 %v1862, %v1858
    %v2019 = vpack.c.b16 %v1863, %v1859
    %v2020 = vpack.c.b16 %v1864, %v1860
    %v2021 = vpack.c.b16 %v1865, %v1861
    %v2022 = vpack.c.b16 %v1870, %v1866
    %v2023 = vpack.c.b16 %v1871, %v1867
    %v2024 = vpack.c.b16 %v1872, %v1868
    %v2025 = vpack.c.b16 %v1873, %v1869
    %v2026 = vpack.c.b16 %v1878, %v1874
    %v2027 = vpack.c.b16 %v1879, %v1875
    %v2028 = vpack.c.b16 %v1880, %v1876
    %v2029 = vpack.c.b16 %v1881, %v1877
    %v2030 = vpack.c.b16 %v1886, %v1882
    %v2031 = vpack.c.b16 %v1887, %v1883
    %v2032 = vpack.c.b16 %v1888, %v1884
    %v2033 = vpack.c.b16 %v1889, %v1885
    %v2034 = vpack.c.b16 %v1894, %v1890
    %v2035 = vpack.c.b16 %v1895, %v1891
    %v2036 = vpack.c.b16 %v1896, %v1892
    %v2037 = vpack.c.b16 %v1897, %v1893
    %v2038 = vpack.c.b16 %v1902, %v1898
    %v2039 = vpack.c.b16 %v1903, %v1899
    %v2040 = vpack.c.b16 %v1904, %v1900
    %v2041 = vpack.c.b16 %v1905, %v1901
    %v2042 = vpack.c.b16 %v1910, %v1906
    %v2043 = vpack.c.b16 %v1911, %v1907
    %v2044 = vpack.c.b16 %v1912, %v1908
    %v2045 = vpack.c.b16 %v1913, %v1909
    %v2046 = vpack.c.b16 %v1918, %v1914
    %v2047 = vpack.c.b16 %v1919, %v1915
    %v2048 = vpack.c.b16 %v1920, %v1916
    %v2049 = vpack.c.b16 %v1921, %v1917
    %2178 = vmatprep.subr.bf16.mxu0 %v1923
    %2179 = vmatpush1.bf16.msra.mxu0 %v1922
    %2180 = vmatprep.subr.bf16.mxu0 %v1927
    %2181 = vmatpush1.bf16.msra.mxu0 %v1926
    %2182 = vmatprep.subr.bf16.mxu0 %v1931
    %2183 = vmatpush1.bf16.msra.mxu0 %v1930
    %2184 = vmatprep.subr.bf16.mxu0 %v1935
    %2185 = vmatpush1.bf16.msra.mxu0 %v1934
    %2186 = vmatprep.subr.bf16.mxu0 %v1939
    %2187 = vmatpush1.bf16.msra.mxu0 %v1938
    %2188 = vmatprep.subr.bf16.mxu0 %v1943
    %2189 = vmatpush1.bf16.msra.mxu0 %v1942
    %2190 = vmatprep.subr.bf16.mxu0 %v1947
    %2191 = vmatpush1.bf16.msra.mxu0 %v1946
    %2192 = vmatprep.subr.bf16.mxu0 %v1951
    %2193 = vmatpush1.bf16.msra.mxu0 %v1950
    %2194 = vmatprep.subr.bf16.mxu0 %v1955
    %2195 = vmatpush1.bf16.msra.mxu0 %v1954
    %2196 = vmatprep.subr.bf16.mxu0 %v1959
    %2197 = vmatpush1.bf16.msra.mxu0 %v1958
    %2198 = vmatprep.subr.bf16.mxu0 %v1963
    %2199 = vmatpush1.bf16.msra.mxu0 %v1962
    %2200 = vmatprep.subr.bf16.mxu0 %v1967
    %2201 = vmatpush1.bf16.msra.mxu0 %v1966
    %2202 = vmatprep.subr.bf16.mxu0 %v1971
    %2203 = vmatpush1.bf16.msra.mxu0 %v1970
    %2204 = vmatprep.subr.bf16.mxu0 %v1975
    %2205 = vmatpush1.bf16.msra.mxu0 %v1974
    %2206 = vmatprep.subr.bf16.mxu0 %v1979
    %2207 = vmatpush1.bf16.msra.mxu0 %v1978
    %2208 = vmatprep.subr.bf16.mxu0 %v1983
    %2209 = vmatpush1.bf16.msra.mxu0 %v1982
    %2210 = vmatprep.mubr.bf16.mxu0 %v1385
    %2211 = vmatmul.mubr.bf16.gmra.mrb[0].mxu0 %v1384
    %v2212 = vpop.f32.mrb[0].mxu0
    %v2213 = vadd.f32 %v1521, %v2212
    %v2214 = vpop.f32.mrb[0].mxu0
    %v2215 = vadd.f32 %v1525, %v2214
    %v2216 = vpop.f32.mrb[0].mxu0
    %v2217 = vpop.f32.mrb[0].mxu0
    %2218 = vdwg.mxu0
    %2219 = vmatprep.subr.bf16.mxu0 %v1987
    %2220 = vmatpush1.bf16.msra.mxu0 %v1986
    %2221 = vmatprep.subr.bf16.mxu0 %v1991
    %2222 = vmatpush1.bf16.msra.mxu0 %v1990
    %2223 = vmatprep.subr.bf16.mxu0 %v1995
    %2224 = vmatpush1.bf16.msra.mxu0 %v1994
    %2225 = vmatprep.subr.bf16.mxu0 %v1999
    %2226 = vmatpush1.bf16.msra.mxu0 %v1998
    %2227 = vmatprep.subr.bf16.mxu0 %v2003
    %2228 = vmatpush1.bf16.msra.mxu0 %v2002
    %2229 = vmatprep.subr.bf16.mxu0 %v2007
    %2230 = vmatpush1.bf16.msra.mxu0 %v2006
    %2231 = vmatprep.subr.bf16.mxu0 %v2011
    %2232 = vmatpush1.bf16.msra.mxu0 %v2010
    %2233 = vmatprep.subr.bf16.mxu0 %v2015
    %2234 = vmatpush1.bf16.msra.mxu0 %v2014
    %2235 = vmatprep.subr.bf16.mxu0 %v2019
    %2236 = vmatpush1.bf16.msra.mxu0 %v2018
    %2237 = vmatprep.subr.bf16.mxu0 %v2023
    %2238 = vmatpush1.bf16.msra.mxu0 %v2022
    %2239 = vmatprep.subr.bf16.mxu0 %v2027
    %2240 = vmatpush1.bf16.msra.mxu0 %v2026
    %2241 = vmatprep.subr.bf16.mxu0 %v2031
    %2242 = vmatpush1.bf16.msra.mxu0 %v2030
    %2243 = vmatprep.subr.bf16.mxu0 %v2035
    %2244 = vmatpush1.bf16.msra.mxu0 %v2034
    %2245 = vmatprep.subr.bf16.mxu0 %v2039
    %2246 = vmatpush1.bf16.msra.mxu0 %v2038
    %2247 = vmatprep.subr.bf16.mxu0 %v2043
    %2248 = vmatpush1.bf16.msra.mxu0 %v2042
    %2249 = vmatprep.subr.bf16.mxu0 %v2047
    %2250 = vmatpush1.bf16.msra.mxu0 %v2046
    %2251 = vmatprep.mubr.bf16.mxu0 %v1387
    %2252 = vmatmul.mubr.bf16.gmra.mrb[0].mxu0 %v1386
    %v2253 = vpop.f32.mrb[0].mxu0
    %v2254 = vadd.f32 %v2213, %v2253
    %v2255 = vpop.f32.mrb[0].mxu0
    %v2256 = vadd.f32 %v2215, %v2255
    %v2257 = vpop.f32.mrb[0].mxu0
    %v2258 = vpop.f32.mrb[0].mxu0
    %2259 = vdwg.mxu0
    %2260 = vmatprep.subr.bf16.mxu0 %v1925
    %2261 = vmatpush1.bf16.msra.mxu0 %v1924
    %2262 = vmatprep.subr.bf16.mxu0 %v1929
    %2263 = vmatpush1.bf16.msra.mxu0 %v1928
    %2264 = vmatprep.subr.bf16.mxu0 %v1933
    %2265 = vmatpush1.bf16.msra.mxu0 %v1932
    %2266 = vmatprep.subr.bf16.mxu0 %v1937
    %2267 = vmatpush1.bf16.msra.mxu0 %v1936
    %2268 = vmatprep.subr.bf16.mxu0 %v1941
    %2269 = vmatpush1.bf16.msra.mxu0 %v1940
    %2270 = vmatprep.subr.bf16.mxu0 %v1945
    %2271 = vmatpush1.bf16.msra.mxu0 %v1944
    %2272 = vmatprep.subr.bf16.mxu0 %v1949
    %2273 = vmatpush1.bf16.msra.mxu0 %v1948
    %2274 = vmatprep.subr.bf16.mxu0 %v1953
    %2275 = vmatpush1.bf16.msra.mxu0 %v1952
    %2276 = vmatprep.subr.bf16.mxu0 %v1957
    %2277 = vmatpush1.bf16.msra.mxu0 %v1956
    %2278 = vmatprep.subr.bf16.mxu0 %v1961
    %2279 = vmatpush1.bf16.msra.mxu0 %v1960
    %2280 = vmatprep.subr.bf16.mxu0 %v1965
    %2281 = vmatpush1.bf16.msra.mxu0 %v1964
    %2282 = vmatprep.subr.bf16.mxu0 %v1969
    %2283 = vmatpush1.bf16.msra.mxu0 %v1968
    %2284 = vmatprep.subr.bf16.mxu0 %v1973
    %2285 = vmatpush1.bf16.msra.mxu0 %v1972
    %2286 = vmatprep.subr.bf16.mxu0 %v1977
    %2287 = vmatpush1.bf16.msra.mxu0 %v1976
    %2288 = vmatprep.subr.bf16.mxu0 %v1981
    %2289 = vmatpush1.bf16.msra.mxu0 %v1980
    %2290 = vmatprep.subr.bf16.mxu0 %v1985
    %2291 = vmatpush1.bf16.msra.mxu0 %v1984
    %2292 = vmatprep.mubr.bf16.mxu0 %v1385
    %2293 = vmatmul.mubr.bf16.gmra.mrb[0].mxu0 %v1384
    %v2294 = vpop.f32.mrb[0].mxu0
    %v2295 = vadd.f32 %v1529, %v2294
    %v2296 = vpop.f32.mrb[0].mxu0
    %v2297 = vadd.f32 %v1533, %v2296
    %v2298 = vpop.f32.mrb[0].mxu0
    %v2299 = vpop.f32.mrb[0].mxu0
    %2300 = vdwg.mxu0
    %2301 = vmatprep.subr.bf16.mxu0 %v1989
    %2302 = vmatpush1.bf16.msra.mxu0 %v1988
    %2303 = vmatprep.subr.bf16.mxu0 %v1993
    %2304 = vmatpush1.bf16.msra.mxu0 %v1992
    %2305 = vmatprep.subr.bf16.mxu0 %v1997
    %2306 = vmatpush1.bf16.msra.mxu0 %v1996
    %2307 = vmatprep.subr.bf16.mxu0 %v2001
    %2308 = vmatpush1.bf16.msra.mxu0 %v2000
    %2309 = vmatprep.subr.bf16.mxu0 %v2005
    %2310 = vmatpush1.bf16.msra.mxu0 %v2004
    %2311 = vmatprep.subr.bf16.mxu0 %v2009
    %2312 = vmatpush1.bf16.msra.mxu0 %v2008
    %2313 = vmatprep.subr.bf16.mxu0 %v2013
    %2314 = vmatpush1.bf16.msra.mxu0 %v2012
    %2315 = vmatprep.subr.bf16.mxu0 %v2017
    %2316 = vmatpush1.bf16.msra.mxu0 %v2016
    %2317 = vmatprep.subr.bf16.mxu0 %v2021
    %2318 = vmatpush1.bf16.msra.mxu0 %v2020
    %2319 = vmatprep.subr.bf16.mxu0 %v2025
    %2320 = vmatpush1.bf16.msra.mxu0 %v2024
    %2321 = vmatprep.subr.bf16.mxu0 %v2029
    %2322 = vmatpush1.bf16.msra.mxu0 %v2028
    %2323 = vmatprep.subr.bf16.mxu0 %v2033
    %2324 = vmatpush1.bf16.msra.mxu0 %v2032
    %2325 = vmatprep.subr.bf16.mxu0 %v2037
    %2326 = vmatpush1.bf16.msra.mxu0 %v2036
    %2327 = vmatprep.subr.bf16.mxu0 %v2041
    %2328 = vmatpush1.bf16.msra.mxu0 %v2040
    %2329 = vmatprep.subr.bf16.mxu0 %v2045
    %2330 = vmatpush1.bf16.msra.mxu0 %v2044
    %2331 = vmatprep.subr.bf16.mxu0 %v2049
    %2332 = vmatpush1.bf16.msra.mxu0 %v2048
    %2333 = vmatprep.mubr.bf16.mxu0 %v1387
    %2334 = vmatmul.mubr.bf16.gmra.mrb[0].mxu0 %v1386
    %v2335 = vpop.f32.mrb[0].mxu0
    %v2336 = vadd.f32 %v2295, %v2335
    %v2337 = vpop.f32.mrb[0].mxu0
    %v2338 = vadd.f32 %v2297, %v2337
    %v2339 = vpop.f32.mrb[0].mxu0
    %v2340 = vpop.f32.mrb[0].mxu0
    %2341 = vdwg.mxu0
    %v2342 = vmax.f32 %v2254, 0.0
    %v2343 = vmax.f32 %v2256, 0.0
    %v2344 = vmax.f32 %v2336, 0.0
    %v2345 = vmax.f32 %v2338, 0.0
    %v2346 = vpack.c.bf16 %v2342, %v2342
    %v2347 = vpack.c.bf16 %v2343, %v2343
    %v2348 = vpack.c.bf16 %v2344, %v2344
    %v2349 = vpack.c.bf16 %v2345, %v2345
    %v2350 = vld [vmem:[#allocation10] sm:$0xff]
    %v2351 = vld [vmem:[#allocation10 + $0x8] sm:$0xff]
    %v2352 = vld [vmem:[#allocation10 + $0x10] sm:$0xff]
    %v2353 = vld [vmem:[#allocation10 + $0x18] sm:$0xff]
    %v2354 = vld [vmem:[#allocation10 + $0x20] sm:$0xff]
    %v2355 = vld [vmem:[#allocation10 + $0x28] sm:$0xff]
    %v2356 = vld [vmem:[#allocation10 + $0x30] sm:$0xff]
    %v2357 = vld [vmem:[#allocation10 + $0x38] sm:$0xff]
    %v2358 = vld [vmem:[#allocation10 + $0x40] sm:$0xff]
    %v2359 = vld [vmem:[#allocation10 + $0x48] sm:$0xff]
    %v2360 = vld [vmem:[#allocation10 + $0x50] sm:$0xff]
    %v2361 = vld [vmem:[#allocation10 + $0x58] sm:$0xff]
    %v2362 = vld [vmem:[#allocation10 + $0x60] sm:$0xff]
    %v2363 = vld [vmem:[#allocation10 + $0x68] sm:$0xff]
    %v2364 = vld [vmem:[#allocation10 + $0x70] sm:$0xff]
    %v2365 = vld [vmem:[#allocation10 + $0x78] sm:$0xff]
    %v2366 = vld [vmem:[#allocation10 + $0x80] sm:$0xff]
    %v2367 = vld [vmem:[#allocation10 + $0x88] sm:$0xff]
    %v2368 = vld [vmem:[#allocation10 + $0x90] sm:$0xff]
    %v2369 = vld [vmem:[#allocation10 + $0x98] sm:$0xff]
    %v2370 = vld [vmem:[#allocation10 + $0xa0] sm:$0xff]
    %v2371 = vld [vmem:[#allocation10 + $0xa8] sm:$0xff]
    %v2372 = vld [vmem:[#allocation10 + $0xb0] sm:$0xff]
    %v2373 = vld [vmem:[#allocation10 + $0xb8] sm:$0xff]
    %v2374 = vld [vmem:[#allocation10 + $0xc0] sm:$0xff]
    %v2375 = vld [vmem:[#allocation10 + $0xc8] sm:$0xff]
    %v2376 = vld [vmem:[#allocation10 + $0xd0] sm:$0xff]
    %v2377 = vld [vmem:[#allocation10 + $0xd8] sm:$0xff]
    %v2378 = vld [vmem:[#allocation10 + $0xe0] sm:$0xff]
    %v2379 = vld [vmem:[#allocation10 + $0xe8] sm:$0xff]
    %v2380 = vld [vmem:[#allocation10 + $0xf0] sm:$0xff]
    %v2381 = vld [vmem:[#allocation10 + $0xf8] sm:$0xff]
    %v2382 = vld [vmem:[#allocation10 + $0x100] sm:$0xff]
    %v2383 = vld [vmem:[#allocation10 + $0x108] sm:$0xff]
    %v2384 = vld [vmem:[#allocation10 + $0x110] sm:$0xff]
    %v2385 = vld [vmem:[#allocation10 + $0x118] sm:$0xff]
    %v2386 = vld [vmem:[#allocation10 + $0x120] sm:$0xff]
    %v2387 = vld [vmem:[#allocation10 + $0x128] sm:$0xff]
    %v2388 = vld [vmem:[#allocation10 + $0x130] sm:$0xff]
    %v2389 = vld [vmem:[#allocation10 + $0x138] sm:$0xff]
    %v2390 = vld [vmem:[#allocation10 + $0x140] sm:$0xff]
    %v2391 = vld [vmem:[#allocation10 + $0x148] sm:$0xff]
    %v2392 = vld [vmem:[#allocation10 + $0x150] sm:$0xff]
    %v2393 = vld [vmem:[#allocation10 + $0x158] sm:$0xff]
    %v2394 = vld [vmem:[#allocation10 + $0x160] sm:$0xff]
    %v2395 = vld [vmem:[#allocation10 + $0x168] sm:$0xff]
    %v2396 = vld [vmem:[#allocation10 + $0x170] sm:$0xff]
    %v2397 = vld [vmem:[#allocation10 + $0x178] sm:$0xff]
    %v2398 = vld [vmem:[#allocation10 + $0x180] sm:$0xff]
    %v2399 = vld [vmem:[#allocation10 + $0x188] sm:$0xff]
    %v2400 = vld [vmem:[#allocation10 + $0x190] sm:$0xff]
    %v2401 = vld [vmem:[#allocation10 + $0x198] sm:$0xff]
    %v2402 = vld [vmem:[#allocation10 + $0x1a0] sm:$0xff]
    %v2403 = vld [vmem:[#allocation10 + $0x1a8] sm:$0xff]
    %v2404 = vld [vmem:[#allocation10 + $0x1b0] sm:$0xff]
    %v2405 = vld [vmem:[#allocation10 + $0x1b8] sm:$0xff]
    %v2406 = vld [vmem:[#allocation10 + $0x1c0] sm:$0xff]
    %v2407 = vld [vmem:[#allocation10 + $0x1c8] sm:$0xff]
    %v2408 = vld [vmem:[#allocation10 + $0x1d0] sm:$0xff]
    %v2409 = vld [vmem:[#allocation10 + $0x1d8] sm:$0xff]
    %v2410 = vld [vmem:[#allocation10 + $0x1e0] sm:$0xff]
    %v2411 = vld [vmem:[#allocation10 + $0x1e8] sm:$0xff]
    %v2412 = vld [vmem:[#allocation10 + $0x1f0] sm:$0xff]
    %v2413 = vld [vmem:[#allocation10 + $0x1f8] sm:$0xff]
    %v2414 = vld [vmem:[%s8] sm:$0x3]
    %v2416 = vlaneseq
    %v2417 = vshrl.u32 %v2416, 7
    %v2418 = vsub.s32 0, %v2417
    %v2419 = vrot.slane %v2414, %v2418
    %v2420 = vlaneseq
    %v2421 = vshrl.u32 %v2420, 7
    %v2422 = vsub.s32 1, %v2421
    %v2423 = vrot.slane %v2414, %v2422
    %v2490 = vunpack.c.l.b16 %v2350
    %v2491 = vunpack.c.h.b16 %v2350
    %v2492 = vunpack.c.l.b16 %v2351
    %v2493 = vunpack.c.h.b16 %v2351
    %v2494 = vunpack.c.l.b16 %v2352
    %v2495 = vunpack.c.h.b16 %v2352
    %v2496 = vunpack.c.l.b16 %v2353
    %v2497 = vunpack.c.h.b16 %v2353
    %v2498 = vunpack.c.l.b16 %v2354
    %v2499 = vunpack.c.h.b16 %v2354
    %v2500 = vunpack.c.l.b16 %v2355
    %v2501 = vunpack.c.h.b16 %v2355
    %v2502 = vunpack.c.l.b16 %v2356
    %v2503 = vunpack.c.h.b16 %v2356
    %v2504 = vunpack.c.l.b16 %v2357
    %v2505 = vunpack.c.h.b16 %v2357
    %v2506 = vunpack.c.l.b16 %v2358
    %v2507 = vunpack.c.h.b16 %v2358
    %v2508 = vunpack.c.l.b16 %v2359
    %v2509 = vunpack.c.h.b16 %v2359
    %v2510 = vunpack.c.l.b16 %v2360
    %v2511 = vunpack.c.h.b16 %v2360
    %v2512 = vunpack.c.l.b16 %v2361
    %v2513 = vunpack.c.h.b16 %v2361
    %v2514 = vunpack.c.l.b16 %v2362
    %v2515 = vunpack.c.h.b16 %v2362
    %v2516 = vunpack.c.l.b16 %v2363
    %v2517 = vunpack.c.h.b16 %v2363
    %v2518 = vunpack.c.l.b16 %v2364
    %v2519 = vunpack.c.h.b16 %v2364
    %v2520 = vunpack.c.l.b16 %v2365
    %v2521 = vunpack.c.h.b16 %v2365
    %v2522 = vunpack.c.l.b16 %v2366
    %v2523 = vunpack.c.h.b16 %v2366
    %v2524 = vunpack.c.l.b16 %v2367
    %v2525 = vunpack.c.h.b16 %v2367
    %v2526 = vunpack.c.l.b16 %v2368
    %v2527 = vunpack.c.h.b16 %v2368
    %v2528 = vunpack.c.l.b16 %v2369
    %v2529 = vunpack.c.h.b16 %v2369
    %v2530 = vunpack.c.l.b16 %v2370
    %v2531 = vunpack.c.h.b16 %v2370
    %v2532 = vunpack.c.l.b16 %v2371
    %v2533 = vunpack.c.h.b16 %v2371
    %v2534 = vunpack.c.l.b16 %v2372
    %v2535 = vunpack.c.h.b16 %v2372
    %v2536 = vunpack.c.l.b16 %v2373
    %v2537 = vunpack.c.h.b16 %v2373
    %v2538 = vunpack.c.l.b16 %v2374
    %v2539 = vunpack.c.h.b16 %v2374
    %v2540 = vunpack.c.l.b16 %v2375
    %v2541 = vunpack.c.h.b16 %v2375
    %v2542 = vunpack.c.l.b16 %v2376
    %v2543 = vunpack.c.h.b16 %v2376
    %v2544 = vunpack.c.l.b16 %v2377
    %v2545 = vunpack.c.h.b16 %v2377
    %v2546 = vunpack.c.l.b16 %v2378
    %v2547 = vunpack.c.h.b16 %v2378
    %v2548 = vunpack.c.l.b16 %v2379
    %v2549 = vunpack.c.h.b16 %v2379
    %v2550 = vunpack.c.l.b16 %v2380
    %v2551 = vunpack.c.h.b16 %v2380
    %v2552 = vunpack.c.l.b16 %v2381
    %v2553 = vunpack.c.h.b16 %v2381
    %v2554 = vunpack.c.l.b16 %v2382
    %v2555 = vunpack.c.h.b16 %v2382
    %v2556 = vunpack.c.l.b16 %v2383
    %v2557 = vunpack.c.h.b16 %v2383
    %v2558 = vunpack.c.l.b16 %v2384
    %v2559 = vunpack.c.h.b16 %v2384
    %v2560 = vunpack.c.l.b16 %v2385
    %v2561 = vunpack.c.h.b16 %v2385
    %v2562 = vunpack.c.l.b16 %v2386
    %v2563 = vunpack.c.h.b16 %v2386
    %v2564 = vunpack.c.l.b16 %v2387
    %v2565 = vunpack.c.h.b16 %v2387
    %v2566 = vunpack.c.l.b16 %v2388
    %v2567 = vunpack.c.h.b16 %v2388
    %v2568 = vunpack.c.l.b16 %v2389
    %v2569 = vunpack.c.h.b16 %v2389
    %v2570 = vunpack.c.l.b16 %v2390
    %v2571 = vunpack.c.h.b16 %v2390
    %v2572 = vunpack.c.l.b16 %v2391
    %v2573 = vunpack.c.h.b16 %v2391
    %v2574 = vunpack.c.l.b16 %v2392
    %v2575 = vunpack.c.h.b16 %v2392
    %v2576 = vunpack.c.l.b16 %v2393
    %v2577 = vunpack.c.h.b16 %v2393
    %v2578 = vunpack.c.l.b16 %v2394
    %v2579 = vunpack.c.h.b16 %v2394
    %v2580 = vunpack.c.l.b16 %v2395
    %v2581 = vunpack.c.h.b16 %v2395
    %v2582 = vunpack.c.l.b16 %v2396
    %v2583 = vunpack.c.h.b16 %v2396
    %v2584 = vunpack.c.l.b16 %v2397
    %v2585 = vunpack.c.h.b16 %v2397
    %v2586 = vunpack.c.l.b16 %v2398
    %v2587 = vunpack.c.h.b16 %v2398
    %v2588 = vunpack.c.l.b16 %v2399
    %v2589 = vunpack.c.h.b16 %v2399
    %v2590 = vunpack.c.l.b16 %v2400
    %v2591 = vunpack.c.h.b16 %v2400
    %v2592 = vunpack.c.l.b16 %v2401
    %v2593 = vunpack.c.h.b16 %v2401
    %v2594 = vunpack.c.l.b16 %v2402
    %v2595 = vunpack.c.h.b16 %v2402
    %v2596 = vunpack.c.l.b16 %v2403
    %v2597 = vunpack.c.h.b16 %v2403
    %v2598 = vunpack.c.l.b16 %v2404
    %v2599 = vunpack.c.h.b16 %v2404
    %v2600 = vunpack.c.l.b16 %v2405
    %v2601 = vunpack.c.h.b16 %v2405
    %v2602 = vunpack.c.l.b16 %v2406
    %v2603 = vunpack.c.h.b16 %v2406
    %v2604 = vunpack.c.l.b16 %v2407
    %v2605 = vunpack.c.h.b16 %v2407
    %v2606 = vunpack.c.l.b16 %v2408
    %v2607 = vunpack.c.h.b16 %v2408
    %v2608 = vunpack.c.l.b16 %v2409
    %v2609 = vunpack.c.h.b16 %v2409
    %v2610 = vunpack.c.l.b16 %v2410
    %v2611 = vunpack.c.h.b16 %v2410
    %v2612 = vunpack.c.l.b16 %v2411
    %v2613 = vunpack.c.h.b16 %v2411
    %v2614 = vunpack.c.l.b16 %v2412
    %v2615 = vunpack.c.h.b16 %v2412
    %v2616 = vunpack.c.l.b16 %v2413
    %v2617 = vunpack.c.h.b16 %v2413
    %v2618 = vpack.c.b16 %v2492, %v2490
    %v2619 = vpack.c.b16 %v2493, %v2491
    %v2620 = vpack.c.b16 %v2496, %v2494
    %v2621 = vpack.c.b16 %v2497, %v2495
    %v2622 = vpack.c.b16 %v2500, %v2498
    %v2623 = vpack.c.b16 %v2501, %v2499
    %v2624 = vpack.c.b16 %v2504, %v2502
    %v2625 = vpack.c.b16 %v2505, %v2503
    %v2626 = vpack.c.b16 %v2508, %v2506
    %v2627 = vpack.c.b16 %v2509, %v2507
    %v2628 = vpack.c.b16 %v2512, %v2510
    %v2629 = vpack.c.b16 %v2513, %v2511
    %v2630 = vpack.c.b16 %v2516, %v2514
    %v2631 = vpack.c.b16 %v2517, %v2515
    %v2632 = vpack.c.b16 %v2520, %v2518
    %v2633 = vpack.c.b16 %v2521, %v2519
    %v2634 = vpack.c.b16 %v2524, %v2522
    %v2635 = vpack.c.b16 %v2525, %v2523
    %v2636 = vpack.c.b16 %v2528, %v2526
    %v2637 = vpack.c.b16 %v2529, %v2527
    %v2638 = vpack.c.b16 %v2532, %v2530
    %v2639 = vpack.c.b16 %v2533, %v2531
    %v2640 = vpack.c.b16 %v2536, %v2534
    %v2641 = vpack.c.b16 %v2537, %v2535
    %v2642 = vpack.c.b16 %v2540, %v2538
    %v2643 = vpack.c.b16 %v2541, %v2539
    %v2644 = vpack.c.b16 %v2544, %v2542
    %v2645 = vpack.c.b16 %v2545, %v2543
    %v2646 = vpack.c.b16 %v2548, %v2546
    %v2647 = vpack.c.b16 %v2549, %v2547
    %v2648 = vpack.c.b16 %v2552, %v2550
    %v2649 = vpack.c.b16 %v2553, %v2551
    %v2650 = vpack.c.b16 %v2556, %v2554
    %v2651 = vpack.c.b16 %v2557, %v2555
    %v2652 = vpack.c.b16 %v2560, %v2558
    %v2653 = vpack.c.b16 %v2561, %v2559
    %v2654 = vpack.c.b16 %v2564, %v2562
    %v2655 = vpack.c.b16 %v2565, %v2563
    %v2656 = vpack.c.b16 %v2568, %v2566
    %v2657 = vpack.c.b16 %v2569, %v2567
    %v2658 = vpack.c.b16 %v2572, %v2570
    %v2659 = vpack.c.b16 %v2573, %v2571
    %v2660 = vpack.c.b16 %v2576, %v2574
    %v2661 = vpack.c.b16 %v2577, %v2575
    %v2662 = vpack.c.b16 %v2580, %v2578
    %v2663 = vpack.c.b16 %v2581, %v2579
    %v2664 = vpack.c.b16 %v2584, %v2582
    %v2665 = vpack.c.b16 %v2585, %v2583
    %v2666 = vpack.c.b16 %v2588, %v2586
    %v2667 = vpack.c.b16 %v2589, %v2587
    %v2668 = vpack.c.b16 %v2592, %v2590
    %v2669 = vpack.c.b16 %v2593, %v2591
    %v2670 = vpack.c.b16 %v2596, %v2594
    %v2671 = vpack.c.b16 %v2597, %v2595
    %v2672 = vpack.c.b16 %v2600, %v2598
    %v2673 = vpack.c.b16 %v2601, %v2599
    %v2674 = vpack.c.b16 %v2604, %v2602
    %v2675 = vpack.c.b16 %v2605, %v2603
    %v2676 = vpack.c.b16 %v2608, %v2606
    %v2677 = vpack.c.b16 %v2609, %v2607
    %v2678 = vpack.c.b16 %v2612, %v2610
    %v2679 = vpack.c.b16 %v2613, %v2611
    %v2680 = vpack.c.b16 %v2616, %v2614
    %v2681 = vpack.c.b16 %v2617, %v2615
    %2746 = vmatprep.subr.bf16.mxu0 %v2619
    %2747 = vmatpush1.bf16.msra.mxu0 %v2618
    %2748 = vmatprep.subr.bf16.mxu0 %v2621
    %2749 = vmatpush1.bf16.msra.mxu0 %v2620
    %2750 = vmatprep.subr.bf16.mxu0 %v2623
    %2751 = vmatpush1.bf16.msra.mxu0 %v2622
    %2752 = vmatprep.subr.bf16.mxu0 %v2625
    %2753 = vmatpush1.bf16.msra.mxu0 %v2624
    %2754 = vmatprep.subr.bf16.mxu0 %v2627
    %2755 = vmatpush1.bf16.msra.mxu0 %v2626
    %2756 = vmatprep.subr.bf16.mxu0 %v2629
    %2757 = vmatpush1.bf16.msra.mxu0 %v2628
    %2758 = vmatprep.subr.bf16.mxu0 %v2631
    %2759 = vmatpush1.bf16.msra.mxu0 %v2630
    %2760 = vmatprep.subr.bf16.mxu0 %v2633
    %2761 = vmatpush1.bf16.msra.mxu0 %v2632
    %2762 = vmatprep.subr.bf16.mxu0 %v2635
    %2763 = vmatpush1.bf16.msra.mxu0 %v2634
    %2764 = vmatprep.subr.bf16.mxu0 %v2637
    %2765 = vmatpush1.bf16.msra.mxu0 %v2636
    %2766 = vmatprep.subr.bf16.mxu0 %v2639
    %2767 = vmatpush1.bf16.msra.mxu0 %v2638
    %2768 = vmatprep.subr.bf16.mxu0 %v2641
    %2769 = vmatpush1.bf16.msra.mxu0 %v2640
    %2770 = vmatprep.subr.bf16.mxu0 %v2643
    %2771 = vmatpush1.bf16.msra.mxu0 %v2642
    %2772 = vmatprep.subr.bf16.mxu0 %v2645
    %2773 = vmatpush1.bf16.msra.mxu0 %v2644
    %2774 = vmatprep.subr.bf16.mxu0 %v2647
    %2775 = vmatpush1.bf16.msra.mxu0 %v2646
    %2776 = vmatprep.subr.bf16.mxu0 %v2649
    %2777 = vmatpush1.bf16.msra.mxu0 %v2648
    %2778 = vmatprep.mubr.bf16.mxu0 %v2347
    %2779 = vmatmul.mubr.bf16.gmra.mrb[0].mxu0 %v2346
    %v2780 = vpop.f32.mrb[0].mxu0
    %v2781 = vadd.f32 %v2419, %v2780
    %v2782 = vpop.f32.mrb[0].mxu0
    %v2783 = vadd.f32 %v2423, %v2782
    %v2784 = vpop.f32.mrb[0].mxu0
    %v2785 = vpop.f32.mrb[0].mxu0
    %2786 = vdwg.mxu0
    %2787 = vmatprep.subr.bf16.mxu0 %v2651
    %2788 = vmatpush1.bf16.msra.mxu0 %v2650
    %2789 = vmatprep.subr.bf16.mxu0 %v2653
    %2790 = vmatpush1.bf16.msra.mxu0 %v2652
    %2791 = vmatprep.subr.bf16.mxu0 %v2655
    %2792 = vmatpush1.bf16.msra.mxu0 %v2654
    %2793 = vmatprep.subr.bf16.mxu0 %v2657
    %2794 = vmatpush1.bf16.msra.mxu0 %v2656
    %2795 = vmatprep.subr.bf16.mxu0 %v2659
    %2796 = vmatpush1.bf16.msra.mxu0 %v2658
    %2797 = vmatprep.subr.bf16.mxu0 %v2661
    %2798 = vmatpush1.bf16.msra.mxu0 %v2660
    %2799 = vmatprep.subr.bf16.mxu0 %v2663
    %2800 = vmatpush1.bf16.msra.mxu0 %v2662
    %2801 = vmatprep.subr.bf16.mxu0 %v2665
    %2802 = vmatpush1.bf16.msra.mxu0 %v2664
    %2803 = vmatprep.subr.bf16.mxu0 %v2667
    %2804 = vmatpush1.bf16.msra.mxu0 %v2666
    %2805 = vmatprep.subr.bf16.mxu0 %v2669
    %2806 = vmatpush1.bf16.msra.mxu0 %v2668
    %2807 = vmatprep.subr.bf16.mxu0 %v2671
    %2808 = vmatpush1.bf16.msra.mxu0 %v2670
    %2809 = vmatprep.subr.bf16.mxu0 %v2673
    %2810 = vmatpush1.bf16.msra.mxu0 %v2672
    %2811 = vmatprep.subr.bf16.mxu0 %v2675
    %2812 = vmatpush1.bf16.msra.mxu0 %v2674
    %2813 = vmatprep.subr.bf16.mxu0 %v2677
    %2814 = vmatpush1.bf16.msra.mxu0 %v2676
    %2815 = vmatprep.subr.bf16.mxu0 %v2679
    %2816 = vmatpush1.bf16.msra.mxu0 %v2678
    %2817 = vmatprep.subr.bf16.mxu0 %v2681
    %2818 = vmatpush1.bf16.msra.mxu0 %v2680
    %2819 = vmatprep.mubr.bf16.mxu0 %v2349
    %2820 = vmatmul.mubr.bf16.gmra.mrb[0].mxu0 %v2348
    %v2821 = vpop.f32.mrb[0].mxu0
    %v2822 = vadd.f32 %v2781, %v2821
    %v2823 = vpop.f32.mrb[0].mxu0
    %v2824 = vadd.f32 %v2783, %v2823
    %v2825 = vpop.f32.mrb[0].mxu0
    %v2826 = vpop.f32.mrb[0].mxu0
    %2827 = vdwg.mxu0
    %v2828 = vmax.f32 %v2822, 0.0
    %v2829 = vmax.f32 %v2824, 0.0
    %v2830 = vpack.c.bf16 %v2828, %v2828
    %v2831 = vpack.c.bf16 %v2829, %v2829
    %v2832 = vld [vmem:[#allocation11] sm:$0xf]
    %v2833 = vld [vmem:[#allocation11 + $0x4] sm:$0xf]
    %v2834 = vld [vmem:[#allocation11 + $0x8] sm:$0xf]
    %v2835 = vld [vmem:[#allocation11 + $0xc] sm:$0xf]
    %v2836 = vld [vmem:[#allocation11 + $0x10] sm:$0xf]
    %v2837 = vld [vmem:[#allocation11 + $0x14] sm:$0xf]
    %v2838 = vld [vmem:[#allocation11 + $0x18] sm:$0xf]
    %v2839 = vld [vmem:[#allocation11 + $0x1c] sm:$0xf]
    %v2840 = vld [vmem:[#allocation11 + $0x20] sm:$0xf]
    %v2841 = vld [vmem:[#allocation11 + $0x24] sm:$0xf]
    %v2842 = vld [vmem:[#allocation11 + $0x28] sm:$0xf]
    %v2843 = vld [vmem:[#allocation11 + $0x2c] sm:$0xf]
    %v2844 = vld [vmem:[#allocation11 + $0x30] sm:$0xf]
    %v2845 = vld [vmem:[#allocation11 + $0x34] sm:$0xf]
    %v2846 = vld [vmem:[#allocation11 + $0x38] sm:$0xf]
    %v2847 = vld [vmem:[#allocation11 + $0x3c] sm:$0xf]
    %v2848 = vld [vmem:[#allocation11 + $0x40] sm:$0xf]
    %v2849 = vld [vmem:[#allocation11 + $0x44] sm:$0xf]
    %v2850 = vld [vmem:[#allocation11 + $0x48] sm:$0xf]
    %v2851 = vld [vmem:[#allocation11 + $0x4c] sm:$0xf]
    %v2852 = vld [vmem:[#allocation11 + $0x50] sm:$0xf]
    %v2853 = vld [vmem:[#allocation11 + $0x54] sm:$0xf]
    %v2854 = vld [vmem:[#allocation11 + $0x58] sm:$0xf]
    %v2855 = vld [vmem:[#allocation11 + $0x5c] sm:$0xf]
    %v2856 = vld [vmem:[#allocation11 + $0x60] sm:$0xf]
    %v2857 = vld [vmem:[#allocation11 + $0x64] sm:$0xf]
    %v2858 = vld [vmem:[#allocation11 + $0x68] sm:$0xf]
    %v2859 = vld [vmem:[#allocation11 + $0x6c] sm:$0xf]
    %v2860 = vld [vmem:[#allocation11 + $0x70] sm:$0xf]
    %v2861 = vld [vmem:[#allocation11 + $0x74] sm:$0xf]
    %v2862 = vld [vmem:[#allocation11 + $0x78] sm:$0xf]
    %v2863 = vld [vmem:[#allocation11 + $0x7c] sm:$0xf]
    %v2864 = vld [vmem:[%s10] sm:$0x1]
    %v2866 = vlaneseq
    %v2867 = vshrl.u32 %v2866, 7
    %v2868 = vsub.s32 0, %v2867
    %v2869 = vrot.slane %v2864, %v2868
    %v2903 = vunpack.c.l.b16 %v2832
    %v2904 = vunpack.c.l.b16 %v2833
    %v2905 = vunpack.c.l.b16 %v2834
    %v2906 = vunpack.c.l.b16 %v2835
    %v2907 = vunpack.c.l.b16 %v2836
    %v2908 = vunpack.c.l.b16 %v2837
    %v2909 = vunpack.c.l.b16 %v2838
    %v2910 = vunpack.c.l.b16 %v2839
    %v2911 = vunpack.c.l.b16 %v2840
    %v2912 = vunpack.c.l.b16 %v2841
    %v2913 = vunpack.c.l.b16 %v2842
    %v2914 = vunpack.c.l.b16 %v2843
    %v2915 = vunpack.c.l.b16 %v2844
    %v2916 = vunpack.c.l.b16 %v2845
    %v2917 = vunpack.c.l.b16 %v2846
    %v2918 = vunpack.c.l.b16 %v2847
    %v2919 = vunpack.c.l.b16 %v2848
    %v2920 = vunpack.c.l.b16 %v2849
    %v2921 = vunpack.c.l.b16 %v2850
    %v2922 = vunpack.c.l.b16 %v2851
    %v2923 = vunpack.c.l.b16 %v2852
    %v2924 = vunpack.c.l.b16 %v2853
    %v2925 = vunpack.c.l.b16 %v2854
    %v2926 = vunpack.c.l.b16 %v2855
    %v2927 = vunpack.c.l.b16 %v2856
    %v2928 = vunpack.c.l.b16 %v2857
    %v2929 = vunpack.c.l.b16 %v2858
    %v2930 = vunpack.c.l.b16 %v2859
    %v2931 = vunpack.c.l.b16 %v2860
    %v2932 = vunpack.c.l.b16 %v2861
    %v2933 = vunpack.c.l.b16 %v2862
    %v2934 = vunpack.c.l.b16 %v2863
    %v2935 = vpack.c.b16 %v2904, %v2903
    %v2936 = vpack.c.b16 %v2906, %v2905
    %v2937 = vpack.c.b16 %v2908, %v2907
    %v2938 = vpack.c.b16 %v2910, %v2909
    %v2939 = vpack.c.b16 %v2912, %v2911
    %v2940 = vpack.c.b16 %v2914, %v2913
    %v2941 = vpack.c.b16 %v2916, %v2915
    %v2942 = vpack.c.b16 %v2918, %v2917
    %v2943 = vpack.c.b16 %v2920, %v2919
    %v2944 = vpack.c.b16 %v2922, %v2921
    %v2945 = vpack.c.b16 %v2924, %v2923
    %v2946 = vpack.c.b16 %v2926, %v2925
    %v2947 = vpack.c.b16 %v2928, %v2927
    %v2948 = vpack.c.b16 %v2930, %v2929
    %v2949 = vpack.c.b16 %v2932, %v2931
    %v2950 = vpack.c.b16 %v2934, %v2933
    %2967 = vmatprep.subr.bf16.mxu0 0
    %2968 = vmatpush1.bf16.msra.mxu0 %v2935
    %2969 = vmatprep.subr.bf16.mxu0 0
    %2970 = vmatpush1.bf16.msra.mxu0 %v2936
    %2971 = vmatprep.subr.bf16.mxu0 0
    %2972 = vmatpush1.bf16.msra.mxu0 %v2937
    %2973 = vmatprep.subr.bf16.mxu0 0
    %2974 = vmatpush1.bf16.msra.mxu0 %v2938
    %2975 = vmatprep.subr.bf16.mxu0 0
    %2976 = vmatpush1.bf16.msra.mxu0 %v2939
    %2977 = vmatprep.subr.bf16.mxu0 0
    %2978 = vmatpush1.bf16.msra.mxu0 %v2940
    %2979 = vmatprep.subr.bf16.mxu0 0
    %2980 = vmatpush1.bf16.msra.mxu0 %v2941
    %2981 = vmatprep.subr.bf16.mxu0 0
    %2982 = vmatpush1.bf16.msra.mxu0 %v2942
    %2983 = vmatprep.subr.bf16.mxu0 0
    %2984 = vmatpush1.bf16.msra.mxu0 %v2943
    %2985 = vmatprep.subr.bf16.mxu0 0
    %2986 = vmatpush1.bf16.msra.mxu0 %v2944
    %2987 = vmatprep.subr.bf16.mxu0 0
    %2988 = vmatpush1.bf16.msra.mxu0 %v2945
    %2989 = vmatprep.subr.bf16.mxu0 0
    %2990 = vmatpush1.bf16.msra.mxu0 %v2946
    %2991 = vmatprep.subr.bf16.mxu0 0
    %2992 = vmatpush1.bf16.msra.mxu0 %v2947
    %2993 = vmatprep.subr.bf16.mxu0 0
    %2994 = vmatpush1.bf16.msra.mxu0 %v2948
    %2995 = vmatprep.subr.bf16.mxu0 0
    %2996 = vmatpush1.bf16.msra.mxu0 %v2949
    %2997 = vmatprep.subr.bf16.mxu0 0
    %2998 = vmatpush1.bf16.msra.mxu0 %v2950
    %2999 = vmatprep.mubr.bf16.mxu0 %v2831
    %3000 = vmatmul.mubr.bf16.gmra.mrb[0].mxu0 %v2830
    %v3001 = vpop.f32.mrb[0].mxu0
    %v3002 = vadd.f32 %v2869, %v3001
    %v3003 = vpop.f32.mrb[0].mxu0
    %v3004 = vpop.f32.mrb[0].mxu0
    %v3005 = vpop.f32.mrb[0].mxu0
    %3006 = vdwg.mxu0
    %3007 = vst [vmem:[#allocation13] sm:$0xff] %v3002
    // Predicated region
    $region70: #{tpu_custom_call.1} parent=1 // pred_check
      _
    $region71: #{tpu_custom_call.1} parent=1 // pred_check_branch
      %3009 = sbr.rel (0) target = $region73
    $region72: #{tpu_custom_call.1} parent=1 // pred_region
      %s3011 = ssub.s32 128, 128
      %3012 = vsyncadd [#allocation4], %s3011
      %s3014 = sshll.u32 [#allocation13], 4
      %s3015 = int_to_ptr.vmem [resolvable:$true] %s3014
      %3017 = dma.vmem_to_hbm [thread:$0]  %s3015, 128, %s11, [#allocation4]
    $region73: #{tpu_custom_call.1} parent=1 // pred_fallthru
      _
    // Predicated region
    $region74: #{tpu_custom_call.1} parent=1 // pred_check
      _
    $region75: #{tpu_custom_call.1} parent=1 // pred_check_branch
      %3019 = sbr.rel (0) target = $region77
    $region76: #{tpu_custom_call.1} parent=1 // pred_region
      %3020 = dma.done [#allocation4], 128
    $region77: #{tpu_custom_call.1} parent=1 // pred_fallthru
      _
    %3021 = vsyncpa [#allocation3], 1
    %3022 = vsyncpa [#allocation6], 1
    %3023 = vsyncpa [#allocation9], 1
    %3024 = vsyncpa [#allocation12], 1
    %3025 = vsyncpa [#allocation4], 1

</llo_original>
